<compile_context>
chip_gen: v5e
topology: v5e:2x2
jax: 0.10.0
libtpu: 0.0.40
codegen_flags: <defaults>
</compile_context>

<pallas_src>
import jax
import jax.numpy as jnp
from jax.experimental import pallas as pl
from jax.experimental.pallas import tpu as pltpu

CONV_K = 2996                  # Conv1d kernel size (in=out=1 channel)
L_IN = 3000                    # input length so conv out length == 5
CONV_OUT = L_IN - CONV_K + 1   # = 5 == fc1 in_features
LANES = 128                    # lane-dense output width (unmasked stores)
TB_MAX = 512                   # max batch tile (keep <=512: fits v7x VMEM)
TARGET_STEPS = 4               # aim for >=4 grid steps (pipelining + megacore)


def _round_up(n, m):
    return ((n + m - 1) // m) * m


def _sleepnet_kernel(x_ref, wmat_ref, fcw_ref, cb_ref, fb_ref, o_ref):
    # x_ref   : (tb, L_IN)        VMEM  batch tile of the input signal (f32/bf16)
    # wmat_ref: (L_IN, CONV_OUT)  VMEM  banded conv weight matrix, bf16, resident
    # fcw_ref : (1, CONV_OUT)     VMEM  fc1 weight row, f32, resident
    # cb_ref  : (1, 1)            SMEM  conv1 bias (scalar, f32)
    # fb_ref  : (1, 1)            SMEM  fc1 bias (scalar, f32)
    # o_ref   : (tb, LANES)       VMEM  output (same value replicated per lane)

    # Conv1d(1,1,2996) over a length-3000 signal == one banded MXU matmul.
    # bf16 operands -> single MXU pass; f32 accumulation via preferred dtype.
    x_bf = x_ref[...].astype(jnp.bfloat16)
    conv = jnp.dot(x_bf, wmat_ref[...],
                   preferred_element_type=jnp.float32)        # (tb, CONV_OUT)
    conv = jnp.maximum(conv + cb_ref[0, 0], 0.0)              # conv bias + ReLU

    # Linear(5, 1) in full f32 on the VPU/XLU: row-vector multiply + lane sum.
    y = jnp.sum(conv * fcw_ref[...], axis=-1, keepdims=True)  # (tb, 1)
    y = jnp.maximum(y + fb_ref[0, 0], 0.0)                    # fc bias + ReLU

    # Replicate across 128 lanes -> lane-dense, unmasked vector stores.
    o_ref[...] = jnp.broadcast_to(y, o_ref.shape)
    # NOTE: the PyTorch `x - self.logsoftmax(x)` result is never assigned, so
    # it does not affect the output and is intentionally not computed.


def binary_sleep_net_simple(x_ncl, conv_w, conv_b, fc_w, fc_b):
    """x_ncl: (B, 1, 3000) float32 (or bfloat16) -> (B, 1, 1) float32."""
    B = x_ncl.shape[0]
    # Reshape only — no pad, no dtype cast: avoids any extra HBM pass.
    x2d = x_ncl.reshape(B, L_IN)

    # Banded conv-weight matrix: W_mat[m, j] = conv_w[m - j] for j <= m < j+K.
    # Tiny (3000 x 5) and constant -> build in f32, store/stream as bf16.
    w_flat = conv_w.reshape(CONV_K).astype(jnp.float32)
    rel = jnp.arange(L_IN)[:, None] - jnp.arange(CONV_OUT)[None, :]
    w_mat = jnp.where((rel >= 0) & (rel < CONV_K),
                      w_flat[jnp.clip(rel, 0, CONV_K - 1)],
                      jnp.float32(0.0)).astype(jnp.bfloat16)   # (L_IN, CONV_OUT)

    fcw = fc_w.reshape(1, CONV_OUT).astype(jnp.float32)        # fc row, f32
    cb = conv_b.reshape(1, 1).astype(jnp.float32)
    fb = fc_b.reshape(1, 1).astype(jnp.float32)

    # Batch tile: 8-aligned, capped at TB_MAX, and small enough to give at
    # least TARGET_STEPS grid steps when B permits (pipelining + 2 TCs on v7x).
    tb = max(8, min(TB_MAX, _round_up(pl.cdiv(B, TARGET_STEPS), 8)))
    grid = (pl.cdiv(B, tb),)   # partial last block handled by Pallas masking

    out = pl.pallas_call(
        _sleepnet_kernel,
        out_shape=jax.ShapeDtypeStruct((B, LANES), jnp.float32),
        grid=grid,
        in_specs=[
            pl.BlockSpec((tb, L_IN), lambda i: (i, 0)),            # x: batch-tiled
            pl.BlockSpec((L_IN, CONV_OUT), lambda i: (0, 0)),      # W_mat: resident
            pl.BlockSpec((1, CONV_OUT), lambda i: (0, 0)),         # fc row: resident
            pl.BlockSpec(memory_space=pltpu.MemorySpace.SMEM),     # conv bias
            pl.BlockSpec(memory_space=pltpu.MemorySpace.SMEM),     # fc bias
        ],
        out_specs=pl.BlockSpec((tb, LANES), lambda i: (i, 0)),
        compiler_params=pltpu.CompilerParams(
            dimension_semantics=("parallel",),   # megacore-shard batch on v7x
            vmem_limit_bytes=32 * 1024 * 1024,   # safe on v5e/v6e/v7x
        ),
    )(x2d, w_mat, fcw, cb, fb)

    return out[:, 0].reshape(B, 1, 1)


def _reference(x_ncl, conv_w, conv_b, fc_w, fc_b):
    """Pure-JAX reference with the same bf16 rounding of x / conv weights."""
    B = x_ncl.shape[0]
    x = x_ncl.reshape(B, L_IN).astype(jnp.bfloat16).astype(jnp.float32)
    w = conv_w.reshape(CONV_K).astype(jnp.bfloat16).astype(jnp.float32)
    taps = [jnp.sum(x[:, j:j + CONV_K] * w[None, :], axis=1)
            for j in range(CONV_OUT)]
    conv = jnp.maximum(jnp.stack(taps, axis=1) + conv_b.reshape(()), 0.0)
    fc = jnp.sum(conv * fc_w.reshape(1, CONV_OUT).astype(jnp.float32), axis=1)
    fc = jnp.maximum(fc + fc_b.reshape(()), 0.0)
    return fc.reshape(B, 1, 1)


if __name__ == "__main__":
    key = jax.random.PRNGKey(0)
    k_x1, k_x2, k_cw, k_cb, k_fw, k_fb = jax.random.split(key, 6)

    # Deterministic parameter init (PyTorch-style uniform bounds).
    conv_bound = 1.0 / (1 * CONV_K) ** 0.5
    fc_bound = 1.0 / CONV_OUT ** 0.5
    conv_w = jax.random.uniform(k_cw, (1, 1, CONV_K), jnp.float32,
                                -conv_bound, conv_bound)
    conv_b = jax.random.uniform(k_cb, (1,), jnp.float32,
                                -conv_bound, conv_bound)
    fc_w = jax.random.uniform(k_fw, (1, CONV_OUT), jnp.float32,
                              -fc_bound, fc_bound)
    fc_b = jax.random.uniform(k_fb, (1,), jnp.float32, -fc_bound, fc_bound)

    # B=2: single partial block.  B=13: 2-step grid with a partial last block
    # (exercises the no-padding path end-to-end).
    for B, kx in ((2, k_x1), (13, k_x2)):
        x = jax.random.normal(kx, (B, 1, L_IN), dtype=jnp.float32)
        out = jax.block_until_ready(
            binary_sleep_net_simple(x, conv_w, conv_b, fc_w, fc_b))
        ref = _reference(x, conv_w, conv_b, fc_w, fc_b)
        assert out.shape == (B, 1, 1), out.shape
        assert jnp.allclose(out, ref, rtol=1e-3, atol=1e-3), (B, out, ref)

    print("KERNEL_OK")
</pallas_src>

<mosaic_0001>
module attributes {stable_mosaic.version = 11 : i64} {
  func.func @_sleepnet_kernel(%arg0: i32, %arg1: memref<8x3000xf32, #tpu.memory_space<vmem>>, %arg2: memref<3000x5xbf16, #tpu.memory_space<vmem>>, %arg3: memref<1x5xf32, #tpu.memory_space<vmem>>, %arg4: memref<1x1xf32, #tpu.memory_space<smem>>, %arg5: memref<1x1xf32, #tpu.memory_space<smem>>, %arg6: memref<8x128xf32, #tpu.memory_space<vmem>>) attributes {dimension_semantics = [#tpu.dimension_semantics<parallel>], iteration_bounds = array<i64: 1>, scalar_prefetch = 0 : i64, scratch_operands = 0 : i64, tpu.core_type = #tpu.core_type<tc>, window_params = [{transform_indices = @transform_0, window_bounds = array<i64: 8, 3000>}, {pipeline_mode = #tpu.pipeline_mode<synchronous>, transform_indices = @transform_1, window_bounds = array<i64: 3000, 5>}, {pipeline_mode = #tpu.pipeline_mode<synchronous>, transform_indices = @transform_2, window_bounds = array<i64: 1, 5>}, {transform_indices = @transform_3, window_bounds = array<i64: 1, 1>}, {transform_indices = @transform_4, window_bounds = array<i64: 1, 1>}, {transform_indices = @transform_5, window_bounds = array<i64: 8, 128>}]} {
    %c0 = arith.constant 0 : index
    %c0_0 = arith.constant 0 : index
    %0 = vector.load %arg1[%c0, %c0_0] : memref<8x3000xf32, #tpu.memory_space<vmem>>, vector<8x3000xf32>
    %1 = arith.truncf %0 : vector<8x3000xf32> to vector<8x3000xbf16>
    %c0_1 = arith.constant 0 : index
    %c0_2 = arith.constant 0 : index
    %2 = vector.load %arg2[%c0_1, %c0_2] : memref<3000x5xbf16, #tpu.memory_space<vmem>>, vector<3000x5xbf16>
    %cst = arith.constant dense<0.000000e+00> : vector<8x5xf32>
    %3 = tpu.matmul %1, %2, %cst {dimension_numbers = #tpu.dot_dimension_numbers<[1], [0], [0], [1], [0, 0, 1, 1], [], []>} : vector<8x3000xbf16>, vector<3000x5xbf16>, vector<8x5xf32> -> vector<8x5xf32>
    %c0_3 = arith.constant 0 : index
    %c0_4 = arith.constant 0 : index
    %4 = memref.load %arg4[%c0_3, %c0_4] : memref<1x1xf32, #tpu.memory_space<smem>>
    %5 = vector.broadcast %4 : f32 to vector<8x5xf32>
    %6 = arith.addf %3, %5 : vector<8x5xf32>
    %cst_5 = arith.constant 0.000000e+00 : f32
    %7 = vector.broadcast %cst_5 : f32 to vector<8x5xf32>
    %8 = arith.maximumf %6, %7 : vector<8x5xf32>
    %c0_6 = arith.constant 0 : index
    %c0_7 = arith.constant 0 : index
    %9 = vector.load %arg3[%c0_6, %c0_7] : memref<1x5xf32, #tpu.memory_space<vmem>>, vector<1x5xf32>
    %10 = vector.broadcast %9 : vector<1x5xf32> to vector<8x5xf32>
    %11 = arith.mulf %8, %10 : vector<8x5xf32>
    %cst_8 = arith.constant dense<0.000000e+00> : vector<8xf32>
    %12 = vector.multi_reduction <add>, %11, %cst_8 [1] : vector<8x5xf32> to vector<8xf32>
    %13 = vector.shape_cast %12 : vector<8xf32> to vector<8x1xf32>
    %c0_9 = arith.constant 0 : index
    %c0_10 = arith.constant 0 : index
    %14 = memref.load %arg5[%c0_9, %c0_10] : memref<1x1xf32, #tpu.memory_space<smem>>
    %15 = vector.broadcast %14 : f32 to vector<8x1xf32>
    %16 = arith.addf %13, %15 : vector<8x1xf32>
    %cst_11 = arith.constant 0.000000e+00 : f32
    %17 = vector.broadcast %cst_11 : f32 to vector<8x1xf32>
    %18 = arith.maximumf %16, %17 : vector<8x1xf32>
    %19 = vector.shape_cast %18 : vector<8x1xf32> to vector<8x1xf32>
    %20 = vector.broadcast %19 : vector<8x1xf32> to vector<8x128xf32>
    %c0_12 = arith.constant 0 : index
    %c0_13 = arith.constant 0 : index
    %21 = vector.load %arg6[%c0_12, %c0_13] : memref<8x128xf32, #tpu.memory_space<vmem>>, vector<8x128xf32>
    tpu.vector_store %arg6[%c0_12, %c0_13], %20 {strides = array<i32>} : memref<8x128xf32, #tpu.memory_space<vmem>>, vector<8x128xf32>,
    return
  }
  func.func @transform_0(%arg0: i32) -> (i32, i32) {
    %c0_i32 = arith.constant 0 : i32
    %c0_i32_0 = arith.constant 0 : i32
    return %arg0, %c0_i32 : i32, i32
  }
  func.func @transform_1(%arg0: i32) -> (i32, i32) {
    %c0_i32 = arith.constant 0 : i32
    %c0_i32_0 = arith.constant 0 : i32
    %c0_i32_1 = arith.constant 0 : i32
    return %c0_i32, %c0_i32_0 : i32, i32
  }
  func.func @transform_2(%arg0: i32) -> (i32, i32) {
    %c0_i32 = arith.constant 0 : i32
    %c0_i32_0 = arith.constant 0 : i32
    %c0_i32_1 = arith.constant 0 : i32
    return %c0_i32, %c0_i32_0 : i32, i32
  }
  func.func @transform_3(%arg0: i32) -> (i32, i32) {
    %c0_i32 = arith.constant 0 : i32
    %c0_i32_0 = arith.constant 0 : i32
    %c0_i32_1 = arith.constant 0 : i32
    return %c0_i32, %c0_i32_0 : i32, i32
  }
  func.func @transform_4(%arg0: i32) -> (i32, i32) {
    %c0_i32 = arith.constant 0 : i32
    %c0_i32_0 = arith.constant 0 : i32
    %c0_i32_1 = arith.constant 0 : i32
    return %c0_i32, %c0_i32_0 : i32, i32
  }
  func.func @transform_5(%arg0: i32) -> (i32, i32) {
    %c0_i32 = arith.constant 0 : i32
    %c0_i32_0 = arith.constant 0 : i32
    return %arg0, %c0_i32 : i32, i32
  }
}

</mosaic_0001>

<llo_original>
// kernel: tpu_custom_call.1
$region0: #{tpu_custom_call.1}
  #allocation0 [shape = 'u32[]', space=smem, size = 0x4, offset = 0x4, fixed_abs, tag = 'smem constant byte address 0x4 - core index']
  #allocation1 [shape = 'u32[72,128]{1,0:T(1,128)}', space=vmem, size = 0x9000, scoped, tag = 'internal scratch']
  #allocation2 [shape = 'f32[1,1]{1,0:T(1,128)S(6)}', space=smem, size = 0x200, scoped, tag = 'scoped memory for tpu_custom_call.1']
  #allocation3 [shape = 'f32[1,1]{1,0:T(1,128)S(6)}', space=smem, size = 0x200, scoped, tag = 'scoped memory for tpu_custom_call.1']
  %s0 = inlined_call_operand.vmem [shape: f32[2,3000], index: 0, kind: input, shape index: {}]
  %s1 = inlined_call_operand.vmem [shape: bf16[3000,5], index: 1, kind: input, shape index: {}]
  %s2 = inlined_call_operand.vmem [shape: f32[1,5], index: 2, kind: input, shape index: {}]
  %s3 = inlined_call_operand.<no memory space> [shape: f32[1,1], index: 3, kind: input, shape index: {}]
  %s4 = inlined_call_operand.<no memory space> [shape: f32[1,1], index: 4, kind: input, shape index: {}]
  %s5 = inlined_call_operand.hbm [shape: f32[2,128], index: 5, kind: output, shape index: {}]
  %s6 = sld [smem:[#allocation0]]
  $region30: #{tpu_custom_call.1} parent=0
    _
  %s8 = ssub.s32 1, %s6
  %s9 = scalar_select 0, %s8, %s6
  %10 = sst [smem:[#allocation2]] %s3
  %11 = sst [smem:[#allocation3]] %s4
  $region1: #{tpu_custom_call.1} parent=0
    #allocation4 [shape = 'u8[4096]{0}', space=vmem, size = 0x1000, scoped, tag = 'output window, operand 0, single buffered']
    #allocation5 [shape = 's32[1]{0}', space=sflag, size = 0x4, scoped, tag = 'scoped memory for tpu_custom_call.1']
    %12 = vsyncpa [#allocation5], 0
    // Predicated region
    $region2: #{tpu_custom_call.1} parent=1 // pred_check
      _
    $region3: #{tpu_custom_call.1} parent=1 // pred_check_branch
      %14 = sbr.rel (0) target = $region5
    $region4: #{tpu_custom_call.1} parent=1 // pred_region
      _
    $region5: #{tpu_custom_call.1} parent=1 // pred_fallthru
      _
    // Predicated region
    $region6: #{tpu_custom_call.1} parent=1 // pred_check
      _
    $region7: #{tpu_custom_call.1} parent=1 // pred_check_branch
      %16 = sbr.rel (0) target = $region9
    $region8: #{tpu_custom_call.1} parent=1 // pred_region
      _
    $region9: #{tpu_custom_call.1} parent=1 // pred_fallthru
      _
    // Predicated region
    $region10: #{tpu_custom_call.1} parent=1 // pred_check
      _
    $region11: #{tpu_custom_call.1} parent=1 // pred_check_branch
      %18 = sbr.rel (0) target = $region13
    $region12: #{tpu_custom_call.1} parent=1 // pred_region
      _
    $region13: #{tpu_custom_call.1} parent=1 // pred_fallthru
      _
    // Predicated region
    $region14: #{tpu_custom_call.1} parent=1 // pred_check
      _
    $region15: #{tpu_custom_call.1} parent=1 // pred_check_branch
      %20 = sbr.rel (0) target = $region17
    $region16: #{tpu_custom_call.1} parent=1 // pred_region
      _
    $region17: #{tpu_custom_call.1} parent=1 // pred_fallthru
      _
    // Predicated region
    $region18: #{tpu_custom_call.1} parent=1 // pred_check
      _
    $region19: #{tpu_custom_call.1} parent=1 // pred_check_branch
      %22 = sbr.rel (0) target = $region21
    $region20: #{tpu_custom_call.1} parent=1 // pred_region
      _
    $region21: #{tpu_custom_call.1} parent=1 // pred_fallthru
      _
    %v24 = vld [vmem:[%s0] sm:$0xff]
    %v25 = vld [vmem:[%s0 + $0x8] sm:$0xff]
    %v26 = vld [vmem:[%s0 + $0x10] sm:$0xff]
    %v27 = vld [vmem:[%s0 + $0x18] sm:$0xff]
    %v28 = vld [vmem:[%s0 + $0x20] sm:$0xff]
    %v29 = vld [vmem:[%s0 + $0x28] sm:$0xff]
    %v30 = vld [vmem:[%s0 + $0x30] sm:$0xff]
    %v31 = vld [vmem:[%s0 + $0x38] sm:$0xff]
    %v32 = vld [vmem:[%s0 + $0x40] sm:$0xff]
    %v33 = vld [vmem:[%s0 + $0x48] sm:$0xff]
    %v34 = vld [vmem:[%s0 + $0x50] sm:$0xff]
    %v35 = vld [vmem:[%s0 + $0x58] sm:$0xff]
    %v36 = vld [vmem:[%s0 + $0x60] sm:$0xff]
    %v37 = vld [vmem:[%s0 + $0x68] sm:$0xff]
    %v38 = vld [vmem:[%s0 + $0x70] sm:$0xff]
    %v39 = vld [vmem:[%s0 + $0x78] sm:$0xff]
    %v40 = vld [vmem:[%s0 + $0x80] sm:$0xff]
    %v41 = vld [vmem:[%s0 + $0x88] sm:$0xff]
    %v42 = vld [vmem:[%s0 + $0x90] sm:$0xff]
    %v43 = vld [vmem:[%s0 + $0x98] sm:$0xff]
    %v44 = vld [vmem:[%s0 + $0xa0] sm:$0xff]
    %v45 = vld [vmem:[%s0 + $0xa8] sm:$0xff]
    %v46 = vld [vmem:[%s0 + $0xb0] sm:$0xff]
    %v47 = vld [vmem:[%s0 + $0xb8] sm:$0xff]
    %72 = vst [vmem:[#allocation1] ss:$4 sm:$0xff] %v24
    %s73 = scalar_lea.vmem [#allocation1], 1
    %74 = vst [vmem:[%s73] ss:$4 sm:$0xff] %v30
    %s75 = scalar_lea.vmem [#allocation1], 2
    %76 = vst [vmem:[%s75] ss:$4 sm:$0xff] %v36
    %s77 = scalar_lea.vmem [#allocation1], 3
    %78 = vst [vmem:[%s77] ss:$4 sm:$0xff] %v42
    %s79 = scalar_lea.vmem [#allocation1], 32
    %80 = vst [vmem:[%s79] ss:$4 sm:$0xff] %v25
    %s81 = scalar_lea.vmem [#allocation1], 33
    %82 = vst [vmem:[%s81] ss:$4 sm:$0xff] %v31
    %s83 = scalar_lea.vmem [#allocation1], 34
    %84 = vst [vmem:[%s83] ss:$4 sm:$0xff] %v37
    %s85 = scalar_lea.vmem [#allocation1], 35
    %86 = vst [vmem:[%s85] ss:$4 sm:$0xff] %v43
    %v87 = vld.sshfl [vmem:[#allocation1] sm:$0xff pattern:$0x73625140]
    %v88 = vld.sshfl [vmem:[#allocation1 + $0x8] sm:$0xff pattern:$0x73625140]
    %v89 = vld.sshfl [vmem:[#allocation1 + $0x10] sm:$0xff pattern:$0x73625140]
    %v90 = vld.sshfl [vmem:[#allocation1 + $0x18] sm:$0xff pattern:$0x73625140]
    %v91 = vld.sshfl [vmem:[#allocation1 + $0x20] sm:$0xff pattern:$0x73625140]
    %v92 = vld.sshfl [vmem:[#allocation1 + $0x28] sm:$0xff pattern:$0x73625140]
    %v93 = vld.sshfl [vmem:[#allocation1 + $0x30] sm:$0xff pattern:$0x73625140]
    %v94 = vld.sshfl [vmem:[#allocation1 + $0x38] sm:$0xff pattern:$0x73625140]
    %95 = vst [vmem:[#allocation1] ss:$4 sm:$0xff] %v26
    %96 = vst [vmem:[%s73] ss:$4 sm:$0xff] %v32
    %97 = vst [vmem:[%s75] ss:$4 sm:$0xff] %v38
    %98 = vst [vmem:[%s77] ss:$4 sm:$0xff] %v44
    %99 = vst [vmem:[%s79] ss:$4 sm:$0xff] %v27
    %100 = vst [vmem:[%s81] ss:$4 sm:$0xff] %v33
    %101 = vst [vmem:[%s83] ss:$4 sm:$0xff] %v39
    %102 = vst [vmem:[%s85] ss:$4 sm:$0xff] %v45
    %v103 = vld.sshfl [vmem:[#allocation1] sm:$0xff pattern:$0x73625140]
    %v104 = vld.sshfl [vmem:[#allocation1 + $0x8] sm:$0xff pattern:$0x73625140]
    %v105 = vld.sshfl [vmem:[#allocation1 + $0x10] sm:$0xff pattern:$0x73625140]
    %v106 = vld.sshfl [vmem:[#allocation1 + $0x18] sm:$0xff pattern:$0x73625140]
    %v107 = vld.sshfl [vmem:[#allocation1 + $0x20] sm:$0xff pattern:$0x73625140]
    %v108 = vld.sshfl [vmem:[#allocation1 + $0x28] sm:$0xff pattern:$0x73625140]
    %v109 = vld.sshfl [vmem:[#allocation1 + $0x30] sm:$0xff pattern:$0x73625140]
    %v110 = vld.sshfl [vmem:[#allocation1 + $0x38] sm:$0xff pattern:$0x73625140]
    %111 = vst [vmem:[#allocation1] ss:$4 sm:$0xff] %v28
    %112 = vst [vmem:[%s73] ss:$4 sm:$0xff] %v34
    %113 = vst [vmem:[%s75] ss:$4 sm:$0xff] %v40
    %114 = vst [vmem:[%s77] ss:$4 sm:$0xff] %v46
    %115 = vst [vmem:[%s79] ss:$4 sm:$0xff] %v29
    %116 = vst [vmem:[%s81] ss:$4 sm:$0xff] %v35
    %117 = vst [vmem:[%s83] ss:$4 sm:$0xff] %v41
    %118 = vst [vmem:[%s85] ss:$4 sm:$0xff] %v47
    %v119 = vld.sshfl [vmem:[#allocation1] sm:$0xff pattern:$0x73625140]
    %v120 = vld.sshfl [vmem:[#allocation1 + $0x8] sm:$0xff pattern:$0x73625140]
    %v121 = vld.sshfl [vmem:[#allocation1 + $0x10] sm:$0xff pattern:$0x73625140]
    %v122 = vld.sshfl [vmem:[#allocation1 + $0x18] sm:$0xff pattern:$0x73625140]
    %v123 = vld.sshfl [vmem:[#allocation1 + $0x20] sm:$0xff pattern:$0x73625140]
    %v124 = vld.sshfl [vmem:[#allocation1 + $0x28] sm:$0xff pattern:$0x73625140]
    %v125 = vld.sshfl [vmem:[#allocation1 + $0x30] sm:$0xff pattern:$0x73625140]
    %v126 = vld.sshfl [vmem:[#allocation1 + $0x38] sm:$0xff pattern:$0x73625140]
    %v151 = vpack.c.bf16 %v87, %v87
    %v152 = vpack.c.bf16 %v88, %v88
    %v153 = vpack.c.bf16 %v89, %v89
    %v154 = vpack.c.bf16 %v90, %v90
    %v155 = vpack.c.bf16 %v91, %v91
    %v156 = vpack.c.bf16 %v92, %v92
    %v157 = vpack.c.bf16 %v93, %v93
    %v158 = vpack.c.bf16 %v94, %v94
    %v159 = vpack.c.bf16 %v103, %v103
    %v160 = vpack.c.bf16 %v104, %v104
    %v161 = vpack.c.bf16 %v105, %v105
    %v162 = vpack.c.bf16 %v106, %v106
    %v163 = vpack.c.bf16 %v107, %v107
    %v164 = vpack.c.bf16 %v108, %v108
    %v165 = vpack.c.bf16 %v109, %v109
    %v166 = vpack.c.bf16 %v110, %v110
    %v167 = vpack.c.bf16 %v119, %v119
    %v168 = vpack.c.bf16 %v120, %v120
    %v169 = vpack.c.bf16 %v121, %v121
    %v170 = vpack.c.bf16 %v122, %v122
    %v171 = vpack.c.bf16 %v123, %v123
    %v172 = vpack.c.bf16 %v124, %v124
    %v173 = vpack.c.bf16 %v125, %v125
    %v174 = vpack.c.bf16 %v126, %v126
    %v175 = vld [vmem:[%s1] sm:$0xf]
    %v176 = vld [vmem:[%s1 + $0x4] sm:$0xf]
    %v177 = vld [vmem:[%s1 + $0x8] sm:$0xf]
    %v178 = vld [vmem:[%s1 + $0xc] sm:$0xf]
    %v179 = vld [vmem:[%s1 + $0x10] sm:$0xf]
    %v180 = vld [vmem:[%s1 + $0x14] sm:$0xf]
    %v181 = vld [vmem:[%s1 + $0x18] sm:$0xf]
    %v182 = vld [vmem:[%s1 + $0x1c] sm:$0xf]
    %v183 = vld [vmem:[%s1 + $0x20] sm:$0xf]
    %v184 = vld [vmem:[%s1 + $0x24] sm:$0xf]
    %v185 = vld [vmem:[%s1 + $0x28] sm:$0xf]
    %v186 = vld [vmem:[%s1 + $0x2c] sm:$0xf]
    %v187 = vld [vmem:[%s1 + $0x30] sm:$0xf]
    %v188 = vld [vmem:[%s1 + $0x34] sm:$0xf]
    %v189 = vld [vmem:[%s1 + $0x38] sm:$0xf]
    %v190 = vld [vmem:[%s1 + $0x3c] sm:$0xf]
    %v191 = vld [vmem:[%s1 + $0x40] sm:$0xf]
    %v192 = vld [vmem:[%s1 + $0x44] sm:$0xf]
    %v193 = vld [vmem:[%s1 + $0x48] sm:$0xf]
    %v194 = vld [vmem:[%s1 + $0x4c] sm:$0xf]
    %v195 = vld [vmem:[%s1 + $0x50] sm:$0xf]
    %v196 = vld [vmem:[%s1 + $0x54] sm:$0xf]
    %v197 = vld [vmem:[%s1 + $0x58] sm:$0xf]
    %v198 = vld [vmem:[%s1 + $0x5c] sm:$0xf]
    %v199 = vld [vmem:[%s1 + $0x60] sm:$0xf]
    %v200 = vld [vmem:[%s1 + $0x64] sm:$0xf]
    %v201 = vld [vmem:[%s1 + $0x68] sm:$0xf]
    %v202 = vld [vmem:[%s1 + $0x6c] sm:$0xf]
    %v203 = vld [vmem:[%s1 + $0x70] sm:$0xf]
    %v204 = vld [vmem:[%s1 + $0x74] sm:$0xf]
    %v205 = vld [vmem:[%s1 + $0x78] sm:$0xf]
    %v206 = vld [vmem:[%s1 + $0x7c] sm:$0xf]
    %v207 = vld [vmem:[%s1 + $0x80] sm:$0xf]
    %v208 = vld [vmem:[%s1 + $0x84] sm:$0xf]
    %v209 = vld [vmem:[%s1 + $0x88] sm:$0xf]
    %v210 = vld [vmem:[%s1 + $0x8c] sm:$0xf]
    %v211 = vld [vmem:[%s1 + $0x90] sm:$0xf]
    %v212 = vld [vmem:[%s1 + $0x94] sm:$0xf]
    %v213 = vld [vmem:[%s1 + $0x98] sm:$0xf]
    %v214 = vld [vmem:[%s1 + $0x9c] sm:$0xf]
    %v215 = vld [vmem:[%s1 + $0xa0] sm:$0xf]
    %v216 = vld [vmem:[%s1 + $0xa4] sm:$0xf]
    %v217 = vld [vmem:[%s1 + $0xa8] sm:$0xf]
    %v218 = vld [vmem:[%s1 + $0xac] sm:$0xf]
    %v219 = vld [vmem:[%s1 + $0xb0] sm:$0xf]
    %v220 = vld [vmem:[%s1 + $0xb4] sm:$0xf]
    %v221 = vld [vmem:[%s1 + $0xb8] sm:$0xf]
    %v222 = vld [vmem:[%s1 + $0xbc] sm:$0xf]
    %v223 = vld [vmem:[%s1 + $0xc0] sm:$0xf]
    %v224 = vld [vmem:[%s1 + $0xc4] sm:$0xf]
    %v225 = vld [vmem:[%s1 + $0xc8] sm:$0xf]
    %v226 = vld [vmem:[%s1 + $0xcc] sm:$0xf]
    %v227 = vld [vmem:[%s1 + $0xd0] sm:$0xf]
    %v228 = vld [vmem:[%s1 + $0xd4] sm:$0xf]
    %v229 = vld [vmem:[%s1 + $0xd8] sm:$0xf]
    %v230 = vld [vmem:[%s1 + $0xdc] sm:$0xf]
    %v231 = vld [vmem:[%s1 + $0xe0] sm:$0xf]
    %v232 = vld [vmem:[%s1 + $0xe4] sm:$0xf]
    %v233 = vld [vmem:[%s1 + $0xe8] sm:$0xf]
    %v234 = vld [vmem:[%s1 + $0xec] sm:$0xf]
    %v235 = vld [vmem:[%s1 + $0xf0] sm:$0xf]
    %v236 = vld [vmem:[%s1 + $0xf4] sm:$0xf]
    %v237 = vld [vmem:[%s1 + $0xf8] sm:$0xf]
    %v238 = vld [vmem:[%s1 + $0xfc] sm:$0xf]
    %v239 = vld [vmem:[%s1 + $0x100] sm:$0xf]
    %v240 = vld [vmem:[%s1 + $0x104] sm:$0xf]
    %v241 = vld [vmem:[%s1 + $0x108] sm:$0xf]
    %v242 = vld [vmem:[%s1 + $0x10c] sm:$0xf]
    %v243 = vld [vmem:[%s1 + $0x110] sm:$0xf]
    %v244 = vld [vmem:[%s1 + $0x114] sm:$0xf]
    %v245 = vld [vmem:[%s1 + $0x118] sm:$0xf]
    %v246 = vld [vmem:[%s1 + $0x11c] sm:$0xf]
    %v247 = vld [vmem:[%s1 + $0x120] sm:$0xf]
    %v248 = vld [vmem:[%s1 + $0x124] sm:$0xf]
    %v249 = vld [vmem:[%s1 + $0x128] sm:$0xf]
    %v250 = vld [vmem:[%s1 + $0x12c] sm:$0xf]
    %v251 = vld [vmem:[%s1 + $0x130] sm:$0xf]
    %v252 = vld [vmem:[%s1 + $0x134] sm:$0xf]
    %v253 = vld [vmem:[%s1 + $0x138] sm:$0xf]
    %v254 = vld [vmem:[%s1 + $0x13c] sm:$0xf]
    %v255 = vld [vmem:[%s1 + $0x140] sm:$0xf]
    %v256 = vld [vmem:[%s1 + $0x144] sm:$0xf]
    %v257 = vld [vmem:[%s1 + $0x148] sm:$0xf]
    %v258 = vld [vmem:[%s1 + $0x14c] sm:$0xf]
    %v259 = vld [vmem:[%s1 + $0x150] sm:$0xf]
    %v260 = vld [vmem:[%s1 + $0x154] sm:$0xf]
    %v261 = vld [vmem:[%s1 + $0x158] sm:$0xf]
    %v262 = vld [vmem:[%s1 + $0x15c] sm:$0xf]
    %v263 = vld [vmem:[%s1 + $0x160] sm:$0xf]
    %v264 = vld [vmem:[%s1 + $0x164] sm:$0xf]
    %v265 = vld [vmem:[%s1 + $0x168] sm:$0xf]
    %v266 = vld [vmem:[%s1 + $0x16c] sm:$0xf]
    %v267 = vld [vmem:[%s1 + $0x170] sm:$0xf]
    %v268 = vld [vmem:[%s1 + $0x174] sm:$0xf]
    %v269 = vld [vmem:[%s1 + $0x178] sm:$0xf]
    %v270 = vld [vmem:[%s1 + $0x17c] sm:$0xf]
    %v271 = vld [vmem:[%s1 + $0x180] sm:$0xf]
    %v272 = vld [vmem:[%s1 + $0x184] sm:$0xf]
    %v273 = vld [vmem:[%s1 + $0x188] sm:$0xf]
    %v274 = vld [vmem:[%s1 + $0x18c] sm:$0xf]
    %v275 = vld [vmem:[%s1 + $0x190] sm:$0xf]
    %v276 = vld [vmem:[%s1 + $0x194] sm:$0xf]
    %v277 = vld [vmem:[%s1 + $0x198] sm:$0xf]
    %v278 = vld [vmem:[%s1 + $0x19c] sm:$0xf]
    %v279 = vld [vmem:[%s1 + $0x1a0] sm:$0xf]
    %v280 = vld [vmem:[%s1 + $0x1a4] sm:$0xf]
    %v281 = vld [vmem:[%s1 + $0x1a8] sm:$0xf]
    %v282 = vld [vmem:[%s1 + $0x1ac] sm:$0xf]
    %v283 = vld [vmem:[%s1 + $0x1b0] sm:$0xf]
    %v284 = vld [vmem:[%s1 + $0x1b4] sm:$0xf]
    %v285 = vld [vmem:[%s1 + $0x1b8] sm:$0xf]
    %v286 = vld [vmem:[%s1 + $0x1bc] sm:$0xf]
    %v287 = vld [vmem:[%s1 + $0x1c0] sm:$0xf]
    %v288 = vld [vmem:[%s1 + $0x1c4] sm:$0xf]
    %v289 = vld [vmem:[%s1 + $0x1c8] sm:$0xf]
    %v290 = vld [vmem:[%s1 + $0x1cc] sm:$0xf]
    %v291 = vld [vmem:[%s1 + $0x1d0] sm:$0xf]
    %v292 = vld [vmem:[%s1 + $0x1d4] sm:$0xf]
    %v293 = vld [vmem:[%s1 + $0x1d8] sm:$0xf]
    %v294 = vld [vmem:[%s1 + $0x1dc] sm:$0xf]
    %v295 = vld [vmem:[%s1 + $0x1e0] sm:$0xf]
    %v296 = vld [vmem:[%s1 + $0x1e4] sm:$0xf]
    %v297 = vld [vmem:[%s1 + $0x1e8] sm:$0xf]
    %v298 = vld [vmem:[%s1 + $0x1ec] sm:$0xf]
    %v299 = vld [vmem:[%s1 + $0x1f0] sm:$0xf]
    %v300 = vld [vmem:[%s1 + $0x1f4] sm:$0xf]
    %v301 = vld [vmem:[%s1 + $0x1f8] sm:$0xf]
    %v302 = vld [vmem:[%s1 + $0x1fc] sm:$0xf]
    %v303 = vld [vmem:[%s1 + $0x200] sm:$0xf]
    %v304 = vld [vmem:[%s1 + $0x204] sm:$0xf]
    %v305 = vld [vmem:[%s1 + $0x208] sm:$0xf]
    %v306 = vld [vmem:[%s1 + $0x20c] sm:$0xf]
    %v307 = vld [vmem:[%s1 + $0x210] sm:$0xf]
    %v308 = vld [vmem:[%s1 + $0x214] sm:$0xf]
    %v309 = vld [vmem:[%s1 + $0x218] sm:$0xf]
    %v310 = vld [vmem:[%s1 + $0x21c] sm:$0xf]
    %v311 = vld [vmem:[%s1 + $0x220] sm:$0xf]
    %v312 = vld [vmem:[%s1 + $0x224] sm:$0xf]
    %v313 = vld [vmem:[%s1 + $0x228] sm:$0xf]
    %v314 = vld [vmem:[%s1 + $0x22c] sm:$0xf]
    %v315 = vld [vmem:[%s1 + $0x230] sm:$0xf]
    %v316 = vld [vmem:[%s1 + $0x234] sm:$0xf]
    %v317 = vld [vmem:[%s1 + $0x238] sm:$0xf]
    %v318 = vld [vmem:[%s1 + $0x23c] sm:$0xf]
    %v319 = vld [vmem:[%s1 + $0x240] sm:$0xf]
    %v320 = vld [vmem:[%s1 + $0x244] sm:$0xf]
    %v321 = vld [vmem:[%s1 + $0x248] sm:$0xf]
    %v322 = vld [vmem:[%s1 + $0x24c] sm:$0xf]
    %v323 = vld [vmem:[%s1 + $0x250] sm:$0xf]
    %v324 = vld [vmem:[%s1 + $0x254] sm:$0xf]
    %v325 = vld [vmem:[%s1 + $0x258] sm:$0xf]
    %v326 = vld [vmem:[%s1 + $0x25c] sm:$0xf]
    %v327 = vld [vmem:[%s1 + $0x260] sm:$0xf]
    %v328 = vld [vmem:[%s1 + $0x264] sm:$0xf]
    %v329 = vld [vmem:[%s1 + $0x268] sm:$0xf]
    %v330 = vld [vmem:[%s1 + $0x26c] sm:$0xf]
    %v331 = vld [vmem:[%s1 + $0x270] sm:$0xf]
    %v332 = vld [vmem:[%s1 + $0x274] sm:$0xf]
    %v333 = vld [vmem:[%s1 + $0x278] sm:$0xf]
    %v334 = vld [vmem:[%s1 + $0x27c] sm:$0xf]
    %v335 = vld [vmem:[%s1 + $0x280] sm:$0xf]
    %v336 = vld [vmem:[%s1 + $0x284] sm:$0xf]
    %v337 = vld [vmem:[%s1 + $0x288] sm:$0xf]
    %v338 = vld [vmem:[%s1 + $0x28c] sm:$0xf]
    %v339 = vld [vmem:[%s1 + $0x290] sm:$0xf]
    %v340 = vld [vmem:[%s1 + $0x294] sm:$0xf]
    %v341 = vld [vmem:[%s1 + $0x298] sm:$0xf]
    %v342 = vld [vmem:[%s1 + $0x29c] sm:$0xf]
    %v343 = vld [vmem:[%s1 + $0x2a0] sm:$0xf]
    %v344 = vld [vmem:[%s1 + $0x2a4] sm:$0xf]
    %v345 = vld [vmem:[%s1 + $0x2a8] sm:$0xf]
    %v346 = vld [vmem:[%s1 + $0x2ac] sm:$0xf]
    %v347 = vld [vmem:[%s1 + $0x2b0] sm:$0xf]
    %v348 = vld [vmem:[%s1 + $0x2b4] sm:$0xf]
    %v349 = vld [vmem:[%s1 + $0x2b8] sm:$0xf]
    %v350 = vld [vmem:[%s1 + $0x2bc] sm:$0xf]
    %v351 = vld [vmem:[%s1 + $0x2c0] sm:$0xf]
    %v352 = vld [vmem:[%s1 + $0x2c4] sm:$0xf]
    %v353 = vld [vmem:[%s1 + $0x2c8] sm:$0xf]
    %v354 = vld [vmem:[%s1 + $0x2cc] sm:$0xf]
    %v355 = vld [vmem:[%s1 + $0x2d0] sm:$0xf]
    %v356 = vld [vmem:[%s1 + $0x2d4] sm:$0xf]
    %v357 = vld [vmem:[%s1 + $0x2d8] sm:$0xf]
    %v358 = vld [vmem:[%s1 + $0x2dc] sm:$0xf]
    %v359 = vld [vmem:[%s1 + $0x2e0] sm:$0xf]
    %v360 = vld [vmem:[%s1 + $0x2e4] sm:$0xf]
    %v361 = vld [vmem:[%s1 + $0x2e8] sm:$0xf]
    %v362 = vld [vmem:[%s1 + $0x2ec] sm:$0xf]
    %v363 = vld [vmem:[%s1 + $0x2f0] sm:$0xf]
    %v364 = vld [vmem:[%s1 + $0x2f4] sm:$0xf]
    %v365 = vld [vmem:[%s1 + $0x2f8] sm:$0xf]
    %v366 = vld [vmem:[%s1 + $0x2fc] sm:$0xf]
    %v367 = vld [vmem:[%s1 + $0x300] sm:$0xf]
    %v368 = vld [vmem:[%s1 + $0x304] sm:$0xf]
    %v369 = vld [vmem:[%s1 + $0x308] sm:$0xf]
    %v370 = vld [vmem:[%s1 + $0x30c] sm:$0xf]
    %v371 = vld [vmem:[%s1 + $0x310] sm:$0xf]
    %v372 = vld [vmem:[%s1 + $0x314] sm:$0xf]
    %v373 = vld [vmem:[%s1 + $0x318] sm:$0xf]
    %v374 = vld [vmem:[%s1 + $0x31c] sm:$0xf]
    %v375 = vld [vmem:[%s1 + $0x320] sm:$0xf]
    %v376 = vld [vmem:[%s1 + $0x324] sm:$0xf]
    %v377 = vld [vmem:[%s1 + $0x328] sm:$0xf]
    %v378 = vld [vmem:[%s1 + $0x32c] sm:$0xf]
    %v379 = vld [vmem:[%s1 + $0x330] sm:$0xf]
    %v380 = vld [vmem:[%s1 + $0x334] sm:$0xf]
    %v381 = vld [vmem:[%s1 + $0x338] sm:$0xf]
    %v382 = vld [vmem:[%s1 + $0x33c] sm:$0xf]
    %v383 = vld [vmem:[%s1 + $0x340] sm:$0xf]
    %v384 = vld [vmem:[%s1 + $0x344] sm:$0xf]
    %v385 = vld [vmem:[%s1 + $0x348] sm:$0xf]
    %v386 = vld [vmem:[%s1 + $0x34c] sm:$0xf]
    %v387 = vld [vmem:[%s1 + $0x350] sm:$0xf]
    %v388 = vld [vmem:[%s1 + $0x354] sm:$0xf]
    %v389 = vld [vmem:[%s1 + $0x358] sm:$0xf]
    %v390 = vld [vmem:[%s1 + $0x35c] sm:$0xf]
    %v391 = vld [vmem:[%s1 + $0x360] sm:$0xf]
    %v392 = vld [vmem:[%s1 + $0x364] sm:$0xf]
    %v393 = vld [vmem:[%s1 + $0x368] sm:$0xf]
    %v394 = vld [vmem:[%s1 + $0x36c] sm:$0xf]
    %v395 = vld [vmem:[%s1 + $0x370] sm:$0xf]
    %v396 = vld [vmem:[%s1 + $0x374] sm:$0xf]
    %v397 = vld [vmem:[%s1 + $0x378] sm:$0xf]
    %v398 = vld [vmem:[%s1 + $0x37c] sm:$0xf]
    %v399 = vld [vmem:[%s1 + $0x380] sm:$0xf]
    %v400 = vld [vmem:[%s1 + $0x384] sm:$0xf]
    %v401 = vld [vmem:[%s1 + $0x388] sm:$0xf]
    %v402 = vld [vmem:[%s1 + $0x38c] sm:$0xf]
    %v403 = vld [vmem:[%s1 + $0x390] sm:$0xf]
    %v404 = vld [vmem:[%s1 + $0x394] sm:$0xf]
    %v405 = vld [vmem:[%s1 + $0x398] sm:$0xf]
    %v406 = vld [vmem:[%s1 + $0x39c] sm:$0xf]
    %v407 = vld [vmem:[%s1 + $0x3a0] sm:$0xf]
    %v408 = vld [vmem:[%s1 + $0x3a4] sm:$0xf]
    %v409 = vld [vmem:[%s1 + $0x3a8] sm:$0xf]
    %v410 = vld [vmem:[%s1 + $0x3ac] sm:$0xf]
    %v411 = vld [vmem:[%s1 + $0x3b0] sm:$0xf]
    %v412 = vld [vmem:[%s1 + $0x3b4] sm:$0xf]
    %v413 = vld [vmem:[%s1 + $0x3b8] sm:$0xf]
    %v414 = vld [vmem:[%s1 + $0x3bc] sm:$0xf]
    %v415 = vld [vmem:[%s1 + $0x3c0] sm:$0xf]
    %v416 = vld [vmem:[%s1 + $0x3c4] sm:$0xf]
    %v417 = vld [vmem:[%s1 + $0x3c8] sm:$0xf]
    %v418 = vld [vmem:[%s1 + $0x3cc] sm:$0xf]
    %v419 = vld [vmem:[%s1 + $0x3d0] sm:$0xf]
    %v420 = vld [vmem:[%s1 + $0x3d4] sm:$0xf]
    %v421 = vld [vmem:[%s1 + $0x3d8] sm:$0xf]
    %v422 = vld [vmem:[%s1 + $0x3dc] sm:$0xf]
    %v423 = vld [vmem:[%s1 + $0x3e0] sm:$0xf]
    %v424 = vld [vmem:[%s1 + $0x3e4] sm:$0xf]
    %v425 = vld [vmem:[%s1 + $0x3e8] sm:$0xf]
    %v426 = vld [vmem:[%s1 + $0x3ec] sm:$0xf]
    %v427 = vld [vmem:[%s1 + $0x3f0] sm:$0xf]
    %v428 = vld [vmem:[%s1 + $0x3f4] sm:$0xf]
    %v429 = vld [vmem:[%s1 + $0x3f8] sm:$0xf]
    %v430 = vld [vmem:[%s1 + $0x3fc] sm:$0xf]
    %v431 = vld [vmem:[%s1 + $0x400] sm:$0xf]
    %v432 = vld [vmem:[%s1 + $0x404] sm:$0xf]
    %v433 = vld [vmem:[%s1 + $0x408] sm:$0xf]
    %v434 = vld [vmem:[%s1 + $0x40c] sm:$0xf]
    %v435 = vld [vmem:[%s1 + $0x410] sm:$0xf]
    %v436 = vld [vmem:[%s1 + $0x414] sm:$0xf]
    %v437 = vld [vmem:[%s1 + $0x418] sm:$0xf]
    %v438 = vld [vmem:[%s1 + $0x41c] sm:$0xf]
    %v439 = vld [vmem:[%s1 + $0x420] sm:$0xf]
    %v440 = vld [vmem:[%s1 + $0x424] sm:$0xf]
    %v441 = vld [vmem:[%s1 + $0x428] sm:$0xf]
    %v442 = vld [vmem:[%s1 + $0x42c] sm:$0xf]
    %v443 = vld [vmem:[%s1 + $0x430] sm:$0xf]
    %v444 = vld [vmem:[%s1 + $0x434] sm:$0xf]
    %v445 = vld [vmem:[%s1 + $0x438] sm:$0xf]
    %v446 = vld [vmem:[%s1 + $0x43c] sm:$0xf]
    %v447 = vld [vmem:[%s1 + $0x440] sm:$0xf]
    %v448 = vld [vmem:[%s1 + $0x444] sm:$0xf]
    %v449 = vld [vmem:[%s1 + $0x448] sm:$0xf]
    %v450 = vld [vmem:[%s1 + $0x44c] sm:$0xf]
    %v451 = vld [vmem:[%s1 + $0x450] sm:$0xf]
    %v452 = vld [vmem:[%s1 + $0x454] sm:$0xf]
    %v453 = vld [vmem:[%s1 + $0x458] sm:$0xf]
    %v454 = vld [vmem:[%s1 + $0x45c] sm:$0xf]
    %v455 = vld [vmem:[%s1 + $0x460] sm:$0xf]
    %v456 = vld [vmem:[%s1 + $0x464] sm:$0xf]
    %v457 = vld [vmem:[%s1 + $0x468] sm:$0xf]
    %v458 = vld [vmem:[%s1 + $0x46c] sm:$0xf]
    %v459 = vld [vmem:[%s1 + $0x470] sm:$0xf]
    %v460 = vld [vmem:[%s1 + $0x474] sm:$0xf]
    %v461 = vld [vmem:[%s1 + $0x478] sm:$0xf]
    %v462 = vld [vmem:[%s1 + $0x47c] sm:$0xf]
    %v463 = vld [vmem:[%s1 + $0x480] sm:$0xf]
    %v464 = vld [vmem:[%s1 + $0x484] sm:$0xf]
    %v465 = vld [vmem:[%s1 + $0x488] sm:$0xf]
    %v466 = vld [vmem:[%s1 + $0x48c] sm:$0xf]
    %v467 = vld [vmem:[%s1 + $0x490] sm:$0xf]
    %v468 = vld [vmem:[%s1 + $0x494] sm:$0xf]
    %v469 = vld [vmem:[%s1 + $0x498] sm:$0xf]
    %v470 = vld [vmem:[%s1 + $0x49c] sm:$0xf]
    %v471 = vld [vmem:[%s1 + $0x4a0] sm:$0xf]
    %v472 = vld [vmem:[%s1 + $0x4a4] sm:$0xf]
    %v473 = vld [vmem:[%s1 + $0x4a8] sm:$0xf]
    %v474 = vld [vmem:[%s1 + $0x4ac] sm:$0xf]
    %v475 = vld [vmem:[%s1 + $0x4b0] sm:$0xf]
    %v476 = vld [vmem:[%s1 + $0x4b4] sm:$0xf]
    %v477 = vld [vmem:[%s1 + $0x4b8] sm:$0xf]
    %v478 = vld [vmem:[%s1 + $0x4bc] sm:$0xf]
    %v479 = vld [vmem:[%s1 + $0x4c0] sm:$0xf]
    %v480 = vld [vmem:[%s1 + $0x4c4] sm:$0xf]
    %v481 = vld [vmem:[%s1 + $0x4c8] sm:$0xf]
    %v482 = vld [vmem:[%s1 + $0x4cc] sm:$0xf]
    %v483 = vld [vmem:[%s1 + $0x4d0] sm:$0xf]
    %v484 = vld [vmem:[%s1 + $0x4d4] sm:$0xf]
    %v485 = vld [vmem:[%s1 + $0x4d8] sm:$0xf]
    %v486 = vld [vmem:[%s1 + $0x4dc] sm:$0xf]
    %v487 = vld [vmem:[%s1 + $0x4e0] sm:$0xf]
    %v488 = vld [vmem:[%s1 + $0x4e4] sm:$0xf]
    %v489 = vld [vmem:[%s1 + $0x4e8] sm:$0xf]
    %v490 = vld [vmem:[%s1 + $0x4ec] sm:$0xf]
    %v491 = vld [vmem:[%s1 + $0x4f0] sm:$0xf]
    %v492 = vld [vmem:[%s1 + $0x4f4] sm:$0xf]
    %v493 = vld [vmem:[%s1 + $0x4f8] sm:$0xf]
    %v494 = vld [vmem:[%s1 + $0x4fc] sm:$0xf]
    %v495 = vld [vmem:[%s1 + $0x500] sm:$0xf]
    %v496 = vld [vmem:[%s1 + $0x504] sm:$0xf]
    %v497 = vld [vmem:[%s1 + $0x508] sm:$0xf]
    %v498 = vld [vmem:[%s1 + $0x50c] sm:$0xf]
    %v499 = vld [vmem:[%s1 + $0x510] sm:$0xf]
    %v500 = vld [vmem:[%s1 + $0x514] sm:$0xf]
    %v501 = vld [vmem:[%s1 + $0x518] sm:$0xf]
    %v502 = vld [vmem:[%s1 + $0x51c] sm:$0xf]
    %v503 = vld [vmem:[%s1 + $0x520] sm:$0xf]
    %v504 = vld [vmem:[%s1 + $0x524] sm:$0xf]
    %v505 = vld [vmem:[%s1 + $0x528] sm:$0xf]
    %v506 = vld [vmem:[%s1 + $0x52c] sm:$0xf]
    %v507 = vld [vmem:[%s1 + $0x530] sm:$0xf]
    %v508 = vld [vmem:[%s1 + $0x534] sm:$0xf]
    %v509 = vld [vmem:[%s1 + $0x538] sm:$0xf]
    %v510 = vld [vmem:[%s1 + $0x53c] sm:$0xf]
    %v511 = vld [vmem:[%s1 + $0x540] sm:$0xf]
    %v512 = vld [vmem:[%s1 + $0x544] sm:$0xf]
    %v513 = vld [vmem:[%s1 + $0x548] sm:$0xf]
    %v514 = vld [vmem:[%s1 + $0x54c] sm:$0xf]
    %v515 = vld [vmem:[%s1 + $0x550] sm:$0xf]
    %v516 = vld [vmem:[%s1 + $0x554] sm:$0xf]
    %v517 = vld [vmem:[%s1 + $0x558] sm:$0xf]
    %v518 = vld [vmem:[%s1 + $0x55c] sm:$0xf]
    %v519 = vld [vmem:[%s1 + $0x560] sm:$0xf]
    %v520 = vld [vmem:[%s1 + $0x564] sm:$0xf]
    %v521 = vld [vmem:[%s1 + $0x568] sm:$0xf]
    %v522 = vld [vmem:[%s1 + $0x56c] sm:$0xf]
    %v523 = vld [vmem:[%s1 + $0x570] sm:$0xf]
    %v524 = vld [vmem:[%s1 + $0x574] sm:$0xf]
    %v525 = vld [vmem:[%s1 + $0x578] sm:$0xf]
    %v526 = vld [vmem:[%s1 + $0x57c] sm:$0xf]
    %v527 = vld [vmem:[%s1 + $0x580] sm:$0xf]
    %v528 = vld [vmem:[%s1 + $0x584] sm:$0xf]
    %v529 = vld [vmem:[%s1 + $0x588] sm:$0xf]
    %v530 = vld [vmem:[%s1 + $0x58c] sm:$0xf]
    %v531 = vld [vmem:[%s1 + $0x590] sm:$0xf]
    %v532 = vld [vmem:[%s1 + $0x594] sm:$0xf]
    %v533 = vld [vmem:[%s1 + $0x598] sm:$0xf]
    %v534 = vld [vmem:[%s1 + $0x59c] sm:$0xf]
    %v535 = vld [vmem:[%s1 + $0x5a0] sm:$0xf]
    %v536 = vld [vmem:[%s1 + $0x5a4] sm:$0xf]
    %v537 = vld [vmem:[%s1 + $0x5a8] sm:$0xf]
    %v538 = vld [vmem:[%s1 + $0x5ac] sm:$0xf]
    %v539 = vld [vmem:[%s1 + $0x5b0] sm:$0xf]
    %v540 = vld [vmem:[%s1 + $0x5b4] sm:$0xf]
    %v541 = vld [vmem:[%s1 + $0x5b8] sm:$0xf]
    %v542 = vld [vmem:[%s1 + $0x5bc] sm:$0xf]
    %v543 = vld [vmem:[%s1 + $0x5c0] sm:$0xf]
    %v544 = vld [vmem:[%s1 + $0x5c4] sm:$0xf]
    %v545 = vld [vmem:[%s1 + $0x5c8] sm:$0xf]
    %v546 = vld [vmem:[%s1 + $0x5cc] sm:$0xf]
    %v547 = vld [vmem:[%s1 + $0x5d0] sm:$0xf]
    %v548 = vld [vmem:[%s1 + $0x5d4] sm:$0xf]
    %v549 = vld [vmem:[%s1 + $0x5d8] sm:$0xf]
    %s550 = sld [smem:[#allocation2]]
    %v551 = vstv %s550
    %v927 = vunpack.c.l.b16 %v175
    %v928 = vunpack.c.l.b16 %v176
    %v929 = vunpack.c.l.b16 %v177
    %v930 = vunpack.c.l.b16 %v178
    %v931 = vunpack.c.l.b16 %v179
    %v932 = vunpack.c.l.b16 %v180
    %v933 = vunpack.c.l.b16 %v181
    %v934 = vunpack.c.l.b16 %v182
    %v935 = vunpack.c.l.b16 %v183
    %v936 = vunpack.c.l.b16 %v184
    %v937 = vunpack.c.l.b16 %v185
    %v938 = vunpack.c.l.b16 %v186
    %v939 = vunpack.c.l.b16 %v187
    %v940 = vunpack.c.l.b16 %v188
    %v941 = vunpack.c.l.b16 %v189
    %v942 = vunpack.c.l.b16 %v190
    %v943 = vunpack.c.l.b16 %v191
    %v944 = vunpack.c.l.b16 %v192
    %v945 = vunpack.c.l.b16 %v193
    %v946 = vunpack.c.l.b16 %v194
    %v947 = vunpack.c.l.b16 %v195
    %v948 = vunpack.c.l.b16 %v196
    %v949 = vunpack.c.l.b16 %v197
    %v950 = vunpack.c.l.b16 %v198
    %v951 = vunpack.c.l.b16 %v199
    %v952 = vunpack.c.l.b16 %v200
    %v953 = vunpack.c.l.b16 %v201
    %v954 = vunpack.c.l.b16 %v202
    %v955 = vunpack.c.l.b16 %v203
    %v956 = vunpack.c.l.b16 %v204
    %v957 = vunpack.c.l.b16 %v205
    %v958 = vunpack.c.l.b16 %v206
    %v959 = vunpack.c.l.b16 %v207
    %v960 = vunpack.c.l.b16 %v208
    %v961 = vunpack.c.l.b16 %v209
    %v962 = vunpack.c.l.b16 %v210
    %v963 = vunpack.c.l.b16 %v211
    %v964 = vunpack.c.l.b16 %v212
    %v965 = vunpack.c.l.b16 %v213
    %v966 = vunpack.c.l.b16 %v214
    %v967 = vunpack.c.l.b16 %v215
    %v968 = vunpack.c.l.b16 %v216
    %v969 = vunpack.c.l.b16 %v217
    %v970 = vunpack.c.l.b16 %v218
    %v971 = vunpack.c.l.b16 %v219
    %v972 = vunpack.c.l.b16 %v220
    %v973 = vunpack.c.l.b16 %v221
    %v974 = vunpack.c.l.b16 %v222
    %v975 = vunpack.c.l.b16 %v223
    %v976 = vunpack.c.l.b16 %v224
    %v977 = vunpack.c.l.b16 %v225
    %v978 = vunpack.c.l.b16 %v226
    %v979 = vunpack.c.l.b16 %v227
    %v980 = vunpack.c.l.b16 %v228
    %v981 = vunpack.c.l.b16 %v229
    %v982 = vunpack.c.l.b16 %v230
    %v983 = vunpack.c.l.b16 %v231
    %v984 = vunpack.c.l.b16 %v232
    %v985 = vunpack.c.l.b16 %v233
    %v986 = vunpack.c.l.b16 %v234
    %v987 = vunpack.c.l.b16 %v235
    %v988 = vunpack.c.l.b16 %v236
    %v989 = vunpack.c.l.b16 %v237
    %v990 = vunpack.c.l.b16 %v238
    %v991 = vunpack.c.l.b16 %v239
    %v992 = vunpack.c.l.b16 %v240
    %v993 = vunpack.c.l.b16 %v241
    %v994 = vunpack.c.l.b16 %v242
    %v995 = vunpack.c.l.b16 %v243
    %v996 = vunpack.c.l.b16 %v244
    %v997 = vunpack.c.l.b16 %v245
    %v998 = vunpack.c.l.b16 %v246
    %v999 = vunpack.c.l.b16 %v247
    %v1000 = vunpack.c.l.b16 %v248
    %v1001 = vunpack.c.l.b16 %v249
    %v1002 = vunpack.c.l.b16 %v250
    %v1003 = vunpack.c.l.b16 %v251
    %v1004 = vunpack.c.l.b16 %v252
    %v1005 = vunpack.c.l.b16 %v253
    %v1006 = vunpack.c.l.b16 %v254
    %v1007 = vunpack.c.l.b16 %v255
    %v1008 = vunpack.c.l.b16 %v256
    %v1009 = vunpack.c.l.b16 %v257
    %v1010 = vunpack.c.l.b16 %v258
    %v1011 = vunpack.c.l.b16 %v259
    %v1012 = vunpack.c.l.b16 %v260
    %v1013 = vunpack.c.l.b16 %v261
    %v1014 = vunpack.c.l.b16 %v262
    %v1015 = vunpack.c.l.b16 %v263
    %v1016 = vunpack.c.l.b16 %v264
    %v1017 = vunpack.c.l.b16 %v265
    %v1018 = vunpack.c.l.b16 %v266
    %v1019 = vunpack.c.l.b16 %v267
    %v1020 = vunpack.c.l.b16 %v268
    %v1021 = vunpack.c.l.b16 %v269
    %v1022 = vunpack.c.l.b16 %v270
    %v1023 = vunpack.c.l.b16 %v271
    %v1024 = vunpack.c.l.b16 %v272
    %v1025 = vunpack.c.l.b16 %v273
    %v1026 = vunpack.c.l.b16 %v274
    %v1027 = vunpack.c.l.b16 %v275
    %v1028 = vunpack.c.l.b16 %v276
    %v1029 = vunpack.c.l.b16 %v277
    %v1030 = vunpack.c.l.b16 %v278
    %v1031 = vunpack.c.l.b16 %v279
    %v1032 = vunpack.c.l.b16 %v280
    %v1033 = vunpack.c.l.b16 %v281
    %v1034 = vunpack.c.l.b16 %v282
    %v1035 = vunpack.c.l.b16 %v283
    %v1036 = vunpack.c.l.b16 %v284
    %v1037 = vunpack.c.l.b16 %v285
    %v1038 = vunpack.c.l.b16 %v286
    %v1039 = vunpack.c.l.b16 %v287
    %v1040 = vunpack.c.l.b16 %v288
    %v1041 = vunpack.c.l.b16 %v289
    %v1042 = vunpack.c.l.b16 %v290
    %v1043 = vunpack.c.l.b16 %v291
    %v1044 = vunpack.c.l.b16 %v292
    %v1045 = vunpack.c.l.b16 %v293
    %v1046 = vunpack.c.l.b16 %v294
    %v1047 = vunpack.c.l.b16 %v295
    %v1048 = vunpack.c.l.b16 %v296
    %v1049 = vunpack.c.l.b16 %v297
    %v1050 = vunpack.c.l.b16 %v298
    %v1051 = vunpack.c.l.b16 %v299
    %v1052 = vunpack.c.l.b16 %v300
    %v1053 = vunpack.c.l.b16 %v301
    %v1054 = vunpack.c.l.b16 %v302
    %v1055 = vunpack.c.l.b16 %v303
    %v1056 = vunpack.c.l.b16 %v304
    %v1057 = vunpack.c.l.b16 %v305
    %v1058 = vunpack.c.l.b16 %v306
    %v1059 = vunpack.c.l.b16 %v307
    %v1060 = vunpack.c.l.b16 %v308
    %v1061 = vunpack.c.l.b16 %v309
    %v1062 = vunpack.c.l.b16 %v310
    %v1063 = vunpack.c.l.b16 %v311
    %v1064 = vunpack.c.l.b16 %v312
    %v1065 = vunpack.c.l.b16 %v313
    %v1066 = vunpack.c.l.b16 %v314
    %v1067 = vunpack.c.l.b16 %v315
    %v1068 = vunpack.c.l.b16 %v316
    %v1069 = vunpack.c.l.b16 %v317
    %v1070 = vunpack.c.l.b16 %v318
    %v1071 = vunpack.c.l.b16 %v319
    %v1072 = vunpack.c.l.b16 %v320
    %v1073 = vunpack.c.l.b16 %v321
    %v1074 = vunpack.c.l.b16 %v322
    %v1075 = vunpack.c.l.b16 %v323
    %v1076 = vunpack.c.l.b16 %v324
    %v1077 = vunpack.c.l.b16 %v325
    %v1078 = vunpack.c.l.b16 %v326
    %v1079 = vunpack.c.l.b16 %v327
    %v1080 = vunpack.c.l.b16 %v328
    %v1081 = vunpack.c.l.b16 %v329
    %v1082 = vunpack.c.l.b16 %v330
    %v1083 = vunpack.c.l.b16 %v331
    %v1084 = vunpack.c.l.b16 %v332
    %v1085 = vunpack.c.l.b16 %v333
    %v1086 = vunpack.c.l.b16 %v334
    %v1087 = vunpack.c.l.b16 %v335
    %v1088 = vunpack.c.l.b16 %v336
    %v1089 = vunpack.c.l.b16 %v337
    %v1090 = vunpack.c.l.b16 %v338
    %v1091 = vunpack.c.l.b16 %v339
    %v1092 = vunpack.c.l.b16 %v340
    %v1093 = vunpack.c.l.b16 %v341
    %v1094 = vunpack.c.l.b16 %v342
    %v1095 = vunpack.c.l.b16 %v343
    %v1096 = vunpack.c.l.b16 %v344
    %v1097 = vunpack.c.l.b16 %v345
    %v1098 = vunpack.c.l.b16 %v346
    %v1099 = vunpack.c.l.b16 %v347
    %v1100 = vunpack.c.l.b16 %v348
    %v1101 = vunpack.c.l.b16 %v349
    %v1102 = vunpack.c.l.b16 %v350
    %v1103 = vunpack.c.l.b16 %v351
    %v1104 = vunpack.c.l.b16 %v352
    %v1105 = vunpack.c.l.b16 %v353
    %v1106 = vunpack.c.l.b16 %v354
    %v1107 = vunpack.c.l.b16 %v355
    %v1108 = vunpack.c.l.b16 %v356
    %v1109 = vunpack.c.l.b16 %v357
    %v1110 = vunpack.c.l.b16 %v358
    %v1111 = vunpack.c.l.b16 %v359
    %v1112 = vunpack.c.l.b16 %v360
    %v1113 = vunpack.c.l.b16 %v361
    %v1114 = vunpack.c.l.b16 %v362
    %v1115 = vunpack.c.l.b16 %v363
    %v1116 = vunpack.c.l.b16 %v364
    %v1117 = vunpack.c.l.b16 %v365
    %v1118 = vunpack.c.l.b16 %v366
    %v1119 = vunpack.c.l.b16 %v367
    %v1120 = vunpack.c.l.b16 %v368
    %v1121 = vunpack.c.l.b16 %v369
    %v1122 = vunpack.c.l.b16 %v370
    %v1123 = vunpack.c.l.b16 %v371
    %v1124 = vunpack.c.l.b16 %v372
    %v1125 = vunpack.c.l.b16 %v373
    %v1126 = vunpack.c.l.b16 %v374
    %v1127 = vunpack.c.l.b16 %v375
    %v1128 = vunpack.c.l.b16 %v376
    %v1129 = vunpack.c.l.b16 %v377
    %v1130 = vunpack.c.l.b16 %v378
    %v1131 = vunpack.c.l.b16 %v379
    %v1132 = vunpack.c.l.b16 %v380
    %v1133 = vunpack.c.l.b16 %v381
    %v1134 = vunpack.c.l.b16 %v382
    %v1135 = vunpack.c.l.b16 %v383
    %v1136 = vunpack.c.l.b16 %v384
    %v1137 = vunpack.c.l.b16 %v385
    %v1138 = vunpack.c.l.b16 %v386
    %v1139 = vunpack.c.l.b16 %v387
    %v1140 = vunpack.c.l.b16 %v388
    %v1141 = vunpack.c.l.b16 %v389
    %v1142 = vunpack.c.l.b16 %v390
    %v1143 = vunpack.c.l.b16 %v391
    %v1144 = vunpack.c.l.b16 %v392
    %v1145 = vunpack.c.l.b16 %v393
    %v1146 = vunpack.c.l.b16 %v394
    %v1147 = vunpack.c.l.b16 %v395
    %v1148 = vunpack.c.l.b16 %v396
    %v1149 = vunpack.c.l.b16 %v397
    %v1150 = vunpack.c.l.b16 %v398
    %v1151 = vunpack.c.l.b16 %v399
    %v1152 = vunpack.c.l.b16 %v400
    %v1153 = vunpack.c.l.b16 %v401
    %v1154 = vunpack.c.l.b16 %v402
    %v1155 = vunpack.c.l.b16 %v403
    %v1156 = vunpack.c.l.b16 %v404
    %v1157 = vunpack.c.l.b16 %v405
    %v1158 = vunpack.c.l.b16 %v406
    %v1159 = vunpack.c.l.b16 %v407
    %v1160 = vunpack.c.l.b16 %v408
    %v1161 = vunpack.c.l.b16 %v409
    %v1162 = vunpack.c.l.b16 %v410
    %v1163 = vunpack.c.l.b16 %v411
    %v1164 = vunpack.c.l.b16 %v412
    %v1165 = vunpack.c.l.b16 %v413
    %v1166 = vunpack.c.l.b16 %v414
    %v1167 = vunpack.c.l.b16 %v415
    %v1168 = vunpack.c.l.b16 %v416
    %v1169 = vunpack.c.l.b16 %v417
    %v1170 = vunpack.c.l.b16 %v418
    %v1171 = vunpack.c.l.b16 %v419
    %v1172 = vunpack.c.l.b16 %v420
    %v1173 = vunpack.c.l.b16 %v421
    %v1174 = vunpack.c.l.b16 %v422
    %v1175 = vunpack.c.l.b16 %v423
    %v1176 = vunpack.c.l.b16 %v424
    %v1177 = vunpack.c.l.b16 %v425
    %v1178 = vunpack.c.l.b16 %v426
    %v1179 = vunpack.c.l.b16 %v427
    %v1180 = vunpack.c.l.b16 %v428
    %v1181 = vunpack.c.l.b16 %v429
    %v1182 = vunpack.c.l.b16 %v430
    %v1183 = vunpack.c.l.b16 %v431
    %v1184 = vunpack.c.l.b16 %v432
    %v1185 = vunpack.c.l.b16 %v433
    %v1186 = vunpack.c.l.b16 %v434
    %v1187 = vunpack.c.l.b16 %v435
    %v1188 = vunpack.c.l.b16 %v436
    %v1189 = vunpack.c.l.b16 %v437
    %v1190 = vunpack.c.l.b16 %v438
    %v1191 = vunpack.c.l.b16 %v439
    %v1192 = vunpack.c.l.b16 %v440
    %v1193 = vunpack.c.l.b16 %v441
    %v1194 = vunpack.c.l.b16 %v442
    %v1195 = vunpack.c.l.b16 %v443
    %v1196 = vunpack.c.l.b16 %v444
    %v1197 = vunpack.c.l.b16 %v445
    %v1198 = vunpack.c.l.b16 %v446
    %v1199 = vunpack.c.l.b16 %v447
    %v1200 = vunpack.c.l.b16 %v448
    %v1201 = vunpack.c.l.b16 %v449
    %v1202 = vunpack.c.l.b16 %v450
    %v1203 = vunpack.c.l.b16 %v451
    %v1204 = vunpack.c.l.b16 %v452
    %v1205 = vunpack.c.l.b16 %v453
    %v1206 = vunpack.c.l.b16 %v454
    %v1207 = vunpack.c.l.b16 %v455
    %v1208 = vunpack.c.l.b16 %v456
    %v1209 = vunpack.c.l.b16 %v457
    %v1210 = vunpack.c.l.b16 %v458
    %v1211 = vunpack.c.l.b16 %v459
    %v1212 = vunpack.c.l.b16 %v460
    %v1213 = vunpack.c.l.b16 %v461
    %v1214 = vunpack.c.l.b16 %v462
    %v1215 = vunpack.c.l.b16 %v463
    %v1216 = vunpack.c.l.b16 %v464
    %v1217 = vunpack.c.l.b16 %v465
    %v1218 = vunpack.c.l.b16 %v466
    %v1219 = vunpack.c.l.b16 %v467
    %v1220 = vunpack.c.l.b16 %v468
    %v1221 = vunpack.c.l.b16 %v469
    %v1222 = vunpack.c.l.b16 %v470
    %v1223 = vunpack.c.l.b16 %v471
    %v1224 = vunpack.c.l.b16 %v472
    %v1225 = vunpack.c.l.b16 %v473
    %v1226 = vunpack.c.l.b16 %v474
    %v1227 = vunpack.c.l.b16 %v475
    %v1228 = vunpack.c.l.b16 %v476
    %v1229 = vunpack.c.l.b16 %v477
    %v1230 = vunpack.c.l.b16 %v478
    %v1231 = vunpack.c.l.b16 %v479
    %v1232 = vunpack.c.l.b16 %v480
    %v1233 = vunpack.c.l.b16 %v481
    %v1234 = vunpack.c.l.b16 %v482
    %v1235 = vunpack.c.l.b16 %v483
    %v1236 = vunpack.c.l.b16 %v484
    %v1237 = vunpack.c.l.b16 %v485
    %v1238 = vunpack.c.l.b16 %v486
    %v1239 = vunpack.c.l.b16 %v487
    %v1240 = vunpack.c.l.b16 %v488
    %v1241 = vunpack.c.l.b16 %v489
    %v1242 = vunpack.c.l.b16 %v490
    %v1243 = vunpack.c.l.b16 %v491
    %v1244 = vunpack.c.l.b16 %v492
    %v1245 = vunpack.c.l.b16 %v493
    %v1246 = vunpack.c.l.b16 %v494
    %v1247 = vunpack.c.l.b16 %v495
    %v1248 = vunpack.c.l.b16 %v496
    %v1249 = vunpack.c.l.b16 %v497
    %v1250 = vunpack.c.l.b16 %v498
    %v1251 = vunpack.c.l.b16 %v499
    %v1252 = vunpack.c.l.b16 %v500
    %v1253 = vunpack.c.l.b16 %v501
    %v1254 = vunpack.c.l.b16 %v502
    %v1255 = vunpack.c.l.b16 %v503
    %v1256 = vunpack.c.l.b16 %v504
    %v1257 = vunpack.c.l.b16 %v505
    %v1258 = vunpack.c.l.b16 %v506
    %v1259 = vunpack.c.l.b16 %v507
    %v1260 = vunpack.c.l.b16 %v508
    %v1261 = vunpack.c.l.b16 %v509
    %v1262 = vunpack.c.l.b16 %v510
    %v1263 = vunpack.c.l.b16 %v511
    %v1264 = vunpack.c.l.b16 %v512
    %v1265 = vunpack.c.l.b16 %v513
    %v1266 = vunpack.c.l.b16 %v514
    %v1267 = vunpack.c.l.b16 %v515
    %v1268 = vunpack.c.l.b16 %v516
    %v1269 = vunpack.c.l.b16 %v517
    %v1270 = vunpack.c.l.b16 %v518
    %v1271 = vunpack.c.l.b16 %v519
    %v1272 = vunpack.c.l.b16 %v520
    %v1273 = vunpack.c.l.b16 %v521
    %v1274 = vunpack.c.l.b16 %v522
    %v1275 = vunpack.c.l.b16 %v523
    %v1276 = vunpack.c.l.b16 %v524
    %v1277 = vunpack.c.l.b16 %v525
    %v1278 = vunpack.c.l.b16 %v526
    %v1279 = vunpack.c.l.b16 %v527
    %v1280 = vunpack.c.l.b16 %v528
    %v1281 = vunpack.c.l.b16 %v529
    %v1282 = vunpack.c.l.b16 %v530
    %v1283 = vunpack.c.l.b16 %v531
    %v1284 = vunpack.c.l.b16 %v532
    %v1285 = vunpack.c.l.b16 %v533
    %v1286 = vunpack.c.l.b16 %v534
    %v1287 = vunpack.c.l.b16 %v535
    %v1288 = vunpack.c.l.b16 %v536
    %v1289 = vunpack.c.l.b16 %v537
    %v1290 = vunpack.c.l.b16 %v538
    %v1291 = vunpack.c.l.b16 %v539
    %v1292 = vunpack.c.l.b16 %v540
    %v1293 = vunpack.c.l.b16 %v541
    %v1294 = vunpack.c.l.b16 %v542
    %v1295 = vunpack.c.l.b16 %v543
    %v1296 = vunpack.c.l.b16 %v544
    %v1297 = vunpack.c.l.b16 %v545
    %v1298 = vunpack.c.l.b16 %v546
    %v1299 = vunpack.c.l.b16 %v547
    %v1300 = vunpack.c.l.b16 %v548
    %v1301 = vunpack.c.l.b16 %v549
    %v1302 = vpack.c.b16 %v928, %v927
    %v1303 = vpack.c.b16 %v930, %v929
    %v1304 = vpack.c.b16 %v932, %v931
    %v1305 = vpack.c.b16 %v934, %v933
    %v1306 = vpack.c.b16 %v936, %v935
    %v1307 = vpack.c.b16 %v938, %v937
    %v1308 = vpack.c.b16 %v940, %v939
    %v1309 = vpack.c.b16 %v942, %v941
    %v1310 = vpack.c.b16 %v944, %v943
    %v1311 = vpack.c.b16 %v946, %v945
    %v1312 = vpack.c.b16 %v948, %v947
    %v1313 = vpack.c.b16 %v950, %v949
    %v1314 = vpack.c.b16 %v952, %v951
    %v1315 = vpack.c.b16 %v954, %v953
    %v1316 = vpack.c.b16 %v956, %v955
    %v1317 = vpack.c.b16 %v958, %v957
    %v1318 = vpack.c.b16 %v960, %v959
    %v1319 = vpack.c.b16 %v962, %v961
    %v1320 = vpack.c.b16 %v964, %v963
    %v1321 = vpack.c.b16 %v966, %v965
    %v1322 = vpack.c.b16 %v968, %v967
    %v1323 = vpack.c.b16 %v970, %v969
    %v1324 = vpack.c.b16 %v972, %v971
    %v1325 = vpack.c.b16 %v974, %v973
    %v1326 = vpack.c.b16 %v976, %v975
    %v1327 = vpack.c.b16 %v978, %v977
    %v1328 = vpack.c.b16 %v980, %v979
    %v1329 = vpack.c.b16 %v982, %v981
    %v1330 = vpack.c.b16 %v984, %v983
    %v1331 = vpack.c.b16 %v986, %v985
    %v1332 = vpack.c.b16 %v988, %v987
    %v1333 = vpack.c.b16 %v990, %v989
    %v1334 = vpack.c.b16 %v992, %v991
    %v1335 = vpack.c.b16 %v994, %v993
    %v1336 = vpack.c.b16 %v996, %v995
    %v1337 = vpack.c.b16 %v998, %v997
    %v1338 = vpack.c.b16 %v1000, %v999
    %v1339 = vpack.c.b16 %v1002, %v1001
    %v1340 = vpack.c.b16 %v1004, %v1003
    %v1341 = vpack.c.b16 %v1006, %v1005
    %v1342 = vpack.c.b16 %v1008, %v1007
    %v1343 = vpack.c.b16 %v1010, %v1009
    %v1344 = vpack.c.b16 %v1012, %v1011
    %v1345 = vpack.c.b16 %v1014, %v1013
    %v1346 = vpack.c.b16 %v1016, %v1015
    %v1347 = vpack.c.b16 %v1018, %v1017
    %v1348 = vpack.c.b16 %v1020, %v1019
    %v1349 = vpack.c.b16 %v1022, %v1021
    %v1350 = vpack.c.b16 %v1024, %v1023
    %v1351 = vpack.c.b16 %v1026, %v1025
    %v1352 = vpack.c.b16 %v1028, %v1027
    %v1353 = vpack.c.b16 %v1030, %v1029
    %v1354 = vpack.c.b16 %v1032, %v1031
    %v1355 = vpack.c.b16 %v1034, %v1033
    %v1356 = vpack.c.b16 %v1036, %v1035
    %v1357 = vpack.c.b16 %v1038, %v1037
    %v1358 = vpack.c.b16 %v1040, %v1039
    %v1359 = vpack.c.b16 %v1042, %v1041
    %v1360 = vpack.c.b16 %v1044, %v1043
    %v1361 = vpack.c.b16 %v1046, %v1045
    %v1362 = vpack.c.b16 %v1048, %v1047
    %v1363 = vpack.c.b16 %v1050, %v1049
    %v1364 = vpack.c.b16 %v1052, %v1051
    %v1365 = vpack.c.b16 %v1054, %v1053
    %v1366 = vpack.c.b16 %v1056, %v1055
    %v1367 = vpack.c.b16 %v1058, %v1057
    %v1368 = vpack.c.b16 %v1060, %v1059
    %v1369 = vpack.c.b16 %v1062, %v1061
    %v1370 = vpack.c.b16 %v1064, %v1063
    %v1371 = vpack.c.b16 %v1066, %v1065
    %v1372 = vpack.c.b16 %v1068, %v1067
    %v1373 = vpack.c.b16 %v1070, %v1069
    %v1374 = vpack.c.b16 %v1072, %v1071
    %v1375 = vpack.c.b16 %v1074, %v1073
    %v1376 = vpack.c.b16 %v1076, %v1075
    %v1377 = vpack.c.b16 %v1078, %v1077
    %v1378 = vpack.c.b16 %v1080, %v1079
    %v1379 = vpack.c.b16 %v1082, %v1081
    %v1380 = vpack.c.b16 %v1084, %v1083
    %v1381 = vpack.c.b16 %v1086, %v1085
    %v1382 = vpack.c.b16 %v1088, %v1087
    %v1383 = vpack.c.b16 %v1090, %v1089
    %v1384 = vpack.c.b16 %v1092, %v1091
    %v1385 = vpack.c.b16 %v1094, %v1093
    %v1386 = vpack.c.b16 %v1096, %v1095
    %v1387 = vpack.c.b16 %v1098, %v1097
    %v1388 = vpack.c.b16 %v1100, %v1099
    %v1389 = vpack.c.b16 %v1102, %v1101
    %v1390 = vpack.c.b16 %v1104, %v1103
    %v1391 = vpack.c.b16 %v1106, %v1105
    %v1392 = vpack.c.b16 %v1108, %v1107
    %v1393 = vpack.c.b16 %v1110, %v1109
    %v1394 = vpack.c.b16 %v1112, %v1111
    %v1395 = vpack.c.b16 %v1114, %v1113
    %v1396 = vpack.c.b16 %v1116, %v1115
    %v1397 = vpack.c.b16 %v1118, %v1117
    %v1398 = vpack.c.b16 %v1120, %v1119
    %v1399 = vpack.c.b16 %v1122, %v1121
    %v1400 = vpack.c.b16 %v1124, %v1123
    %v1401 = vpack.c.b16 %v1126, %v1125
    %v1402 = vpack.c.b16 %v1128, %v1127
    %v1403 = vpack.c.b16 %v1130, %v1129
    %v1404 = vpack.c.b16 %v1132, %v1131
    %v1405 = vpack.c.b16 %v1134, %v1133
    %v1406 = vpack.c.b16 %v1136, %v1135
    %v1407 = vpack.c.b16 %v1138, %v1137
    %v1408 = vpack.c.b16 %v1140, %v1139
    %v1409 = vpack.c.b16 %v1142, %v1141
    %v1410 = vpack.c.b16 %v1144, %v1143
    %v1411 = vpack.c.b16 %v1146, %v1145
    %v1412 = vpack.c.b16 %v1148, %v1147
    %v1413 = vpack.c.b16 %v1150, %v1149
    %v1414 = vpack.c.b16 %v1152, %v1151
    %v1415 = vpack.c.b16 %v1154, %v1153
    %v1416 = vpack.c.b16 %v1156, %v1155
    %v1417 = vpack.c.b16 %v1158, %v1157
    %v1418 = vpack.c.b16 %v1160, %v1159
    %v1419 = vpack.c.b16 %v1162, %v1161
    %v1420 = vpack.c.b16 %v1164, %v1163
    %v1421 = vpack.c.b16 %v1166, %v1165
    %v1422 = vpack.c.b16 %v1168, %v1167
    %v1423 = vpack.c.b16 %v1170, %v1169
    %v1424 = vpack.c.b16 %v1172, %v1171
    %v1425 = vpack.c.b16 %v1174, %v1173
    %v1426 = vpack.c.b16 %v1176, %v1175
    %v1427 = vpack.c.b16 %v1178, %v1177
    %v1428 = vpack.c.b16 %v1180, %v1179
    %v1429 = vpack.c.b16 %v1182, %v1181
    %v1430 = vpack.c.b16 %v1184, %v1183
    %v1431 = vpack.c.b16 %v1186, %v1185
    %v1432 = vpack.c.b16 %v1188, %v1187
    %v1433 = vpack.c.b16 %v1190, %v1189
    %v1434 = vpack.c.b16 %v1192, %v1191
    %v1435 = vpack.c.b16 %v1194, %v1193
    %v1436 = vpack.c.b16 %v1196, %v1195
    %v1437 = vpack.c.b16 %v1198, %v1197
    %v1438 = vpack.c.b16 %v1200, %v1199
    %v1439 = vpack.c.b16 %v1202, %v1201
    %v1440 = vpack.c.b16 %v1204, %v1203
    %v1441 = vpack.c.b16 %v1206, %v1205
    %v1442 = vpack.c.b16 %v1208, %v1207
    %v1443 = vpack.c.b16 %v1210, %v1209
    %v1444 = vpack.c.b16 %v1212, %v1211
    %v1445 = vpack.c.b16 %v1214, %v1213
    %v1446 = vpack.c.b16 %v1216, %v1215
    %v1447 = vpack.c.b16 %v1218, %v1217
    %v1448 = vpack.c.b16 %v1220, %v1219
    %v1449 = vpack.c.b16 %v1222, %v1221
    %v1450 = vpack.c.b16 %v1224, %v1223
    %v1451 = vpack.c.b16 %v1226, %v1225
    %v1452 = vpack.c.b16 %v1228, %v1227
    %v1453 = vpack.c.b16 %v1230, %v1229
    %v1454 = vpack.c.b16 %v1232, %v1231
    %v1455 = vpack.c.b16 %v1234, %v1233
    %v1456 = vpack.c.b16 %v1236, %v1235
    %v1457 = vpack.c.b16 %v1238, %v1237
    %v1458 = vpack.c.b16 %v1240, %v1239
    %v1459 = vpack.c.b16 %v1242, %v1241
    %v1460 = vpack.c.b16 %v1244, %v1243
    %v1461 = vpack.c.b16 %v1246, %v1245
    %v1462 = vpack.c.b16 %v1248, %v1247
    %v1463 = vpack.c.b16 %v1250, %v1249
    %v1464 = vpack.c.b16 %v1252, %v1251
    %v1465 = vpack.c.b16 %v1254, %v1253
    %v1466 = vpack.c.b16 %v1256, %v1255
    %v1467 = vpack.c.b16 %v1258, %v1257
    %v1468 = vpack.c.b16 %v1260, %v1259
    %v1469 = vpack.c.b16 %v1262, %v1261
    %v1470 = vpack.c.b16 %v1264, %v1263
    %v1471 = vpack.c.b16 %v1266, %v1265
    %v1472 = vpack.c.b16 %v1268, %v1267
    %v1473 = vpack.c.b16 %v1270, %v1269
    %v1474 = vpack.c.b16 %v1272, %v1271
    %v1475 = vpack.c.b16 %v1274, %v1273
    %v1476 = vpack.c.b16 %v1276, %v1275
    %v1477 = vpack.c.b16 %v1278, %v1277
    %v1478 = vpack.c.b16 %v1280, %v1279
    %v1479 = vpack.c.b16 %v1282, %v1281
    %v1480 = vpack.c.b16 %v1284, %v1283
    %v1481 = vpack.c.b16 %v1286, %v1285
    %v1482 = vpack.c.b16 %v1288, %v1287
    %v1483 = vpack.c.b16 %v1290, %v1289
    %v1484 = vpack.c.b16 %v1292, %v1291
    %v1485 = vpack.c.b16 %v1294, %v1293
    %v1486 = vpack.c.b16 %v1296, %v1295
    %v1487 = vpack.c.b16 %v1298, %v1297
    %v1488 = vpack.c.b16 %v1300, %v1299
    %v1489 = vpack.c.b16 %v1301, %v1301
    %vm1677 = vcmask 457728
    %v1679 = vsel %vm1677, %v174, 0
    %vm1681 = vcmask 1043456
    %v1683 = vsel %vm1681, %v1489, 0
    %1685 = vmatpush.bf16.msra.mxu0 %v1309
    %1686 = vmatpush.bf16.msra.mxu0 %v1308
    %1687 = vmatpush.bf16.msra.mxu0 %v1307
    %1688 = vmatpush.bf16.msra.mxu0 %v1306
    %1689 = vmatpush.bf16.msra.mxu0 %v1305
    %1690 = vmatpush.bf16.msra.mxu0 %v1304
    %1691 = vmatpush.bf16.msra.mxu0 %v1303
    %1692 = vmatpush.bf16.msra.mxu0 %v1302
    %1693 = vmatmul.bf16.gmra.mxu0 %v151
    %v1694 = vpop.f32.mrf.mxu0
    %v1695 = vadd.f32 %v551, %v1694
    %v1696 = vpop.f32.mrf.mxu0
    %1697 = vdwg.mxu0
    %1698 = vmatpush.bf16.msra.mxu0 %v1317
    %1699 = vmatpush.bf16.msra.mxu0 %v1316
    %1700 = vmatpush.bf16.msra.mxu0 %v1315
    %1701 = vmatpush.bf16.msra.mxu0 %v1314
    %1702 = vmatpush.bf16.msra.mxu0 %v1313
    %1703 = vmatpush.bf16.msra.mxu0 %v1312
    %1704 = vmatpush.bf16.msra.mxu0 %v1311
    %1705 = vmatpush.bf16.msra.mxu0 %v1310
    %1706 = vmatmul.bf16.gmra.mxu0 %v152
    %v1707 = vpop.f32.mrf.mxu0
    %v1708 = vadd.f32 %v1695, %v1707
    %v1709 = vpop.f32.mrf.mxu0
    %1710 = vdwg.mxu0
    %1711 = vmatpush.bf16.msra.mxu0 %v1325
    %1712 = vmatpush.bf16.msra.mxu0 %v1324
    %1713 = vmatpush.bf16.msra.mxu0 %v1323
    %1714 = vmatpush.bf16.msra.mxu0 %v1322
    %1715 = vmatpush.bf16.msra.mxu0 %v1321
    %1716 = vmatpush.bf16.msra.mxu0 %v1320
    %1717 = vmatpush.bf16.msra.mxu0 %v1319
    %1718 = vmatpush.bf16.msra.mxu0 %v1318
    %1719 = vmatmul.bf16.gmra.mxu0 %v153
    %v1720 = vpop.f32.mrf.mxu0
    %v1721 = vadd.f32 %v1708, %v1720
    %v1722 = vpop.f32.mrf.mxu0
    %1723 = vdwg.mxu0
    %1724 = vmatpush.bf16.msra.mxu0 %v1333
    %1725 = vmatpush.bf16.msra.mxu0 %v1332
    %1726 = vmatpush.bf16.msra.mxu0 %v1331
    %1727 = vmatpush.bf16.msra.mxu0 %v1330
    %1728 = vmatpush.bf16.msra.mxu0 %v1329
    %1729 = vmatpush.bf16.msra.mxu0 %v1328
    %1730 = vmatpush.bf16.msra.mxu0 %v1327
    %1731 = vmatpush.bf16.msra.mxu0 %v1326
    %1732 = vmatmul.bf16.gmra.mxu0 %v154
    %v1733 = vpop.f32.mrf.mxu0
    %v1734 = vadd.f32 %v1721, %v1733
    %v1735 = vpop.f32.mrf.mxu0
    %1736 = vdwg.mxu0
    %1737 = vmatpush.bf16.msra.mxu0 %v1341
    %1738 = vmatpush.bf16.msra.mxu0 %v1340
    %1739 = vmatpush.bf16.msra.mxu0 %v1339
    %1740 = vmatpush.bf16.msra.mxu0 %v1338
    %1741 = vmatpush.bf16.msra.mxu0 %v1337
    %1742 = vmatpush.bf16.msra.mxu0 %v1336
    %1743 = vmatpush.bf16.msra.mxu0 %v1335
    %1744 = vmatpush.bf16.msra.mxu0 %v1334
    %1745 = vmatmul.bf16.gmra.mxu0 %v155
    %v1746 = vpop.f32.mrf.mxu0
    %v1747 = vadd.f32 %v1734, %v1746
    %v1748 = vpop.f32.mrf.mxu0
    %1749 = vdwg.mxu0
    %1750 = vmatpush.bf16.msra.mxu0 %v1349
    %1751 = vmatpush.bf16.msra.mxu0 %v1348
    %1752 = vmatpush.bf16.msra.mxu0 %v1347
    %1753 = vmatpush.bf16.msra.mxu0 %v1346
    %1754 = vmatpush.bf16.msra.mxu0 %v1345
    %1755 = vmatpush.bf16.msra.mxu0 %v1344
    %1756 = vmatpush.bf16.msra.mxu0 %v1343
    %1757 = vmatpush.bf16.msra.mxu0 %v1342
    %1758 = vmatmul.bf16.gmra.mxu0 %v156
    %v1759 = vpop.f32.mrf.mxu0
    %v1760 = vadd.f32 %v1747, %v1759
    %v1761 = vpop.f32.mrf.mxu0
    %1762 = vdwg.mxu0
    %1763 = vmatpush.bf16.msra.mxu0 %v1357
    %1764 = vmatpush.bf16.msra.mxu0 %v1356
    %1765 = vmatpush.bf16.msra.mxu0 %v1355
    %1766 = vmatpush.bf16.msra.mxu0 %v1354
    %1767 = vmatpush.bf16.msra.mxu0 %v1353
    %1768 = vmatpush.bf16.msra.mxu0 %v1352
    %1769 = vmatpush.bf16.msra.mxu0 %v1351
    %1770 = vmatpush.bf16.msra.mxu0 %v1350
    %1771 = vmatmul.bf16.gmra.mxu0 %v157
    %v1772 = vpop.f32.mrf.mxu0
    %v1773 = vadd.f32 %v1760, %v1772
    %v1774 = vpop.f32.mrf.mxu0
    %1775 = vdwg.mxu0
    %1776 = vmatpush.bf16.msra.mxu0 %v1365
    %1777 = vmatpush.bf16.msra.mxu0 %v1364
    %1778 = vmatpush.bf16.msra.mxu0 %v1363
    %1779 = vmatpush.bf16.msra.mxu0 %v1362
    %1780 = vmatpush.bf16.msra.mxu0 %v1361
    %1781 = vmatpush.bf16.msra.mxu0 %v1360
    %1782 = vmatpush.bf16.msra.mxu0 %v1359
    %1783 = vmatpush.bf16.msra.mxu0 %v1358
    %1784 = vmatmul.bf16.gmra.mxu0 %v158
    %v1785 = vpop.f32.mrf.mxu0
    %v1786 = vadd.f32 %v1773, %v1785
    %v1787 = vpop.f32.mrf.mxu0
    %1788 = vdwg.mxu0
    %1789 = vmatpush.bf16.msra.mxu0 %v1373
    %1790 = vmatpush.bf16.msra.mxu0 %v1372
    %1791 = vmatpush.bf16.msra.mxu0 %v1371
    %1792 = vmatpush.bf16.msra.mxu0 %v1370
    %1793 = vmatpush.bf16.msra.mxu0 %v1369
    %1794 = vmatpush.bf16.msra.mxu0 %v1368
    %1795 = vmatpush.bf16.msra.mxu0 %v1367
    %1796 = vmatpush.bf16.msra.mxu0 %v1366
    %1797 = vmatmul.bf16.gmra.mxu0 %v159
    %v1798 = vpop.f32.mrf.mxu0
    %v1799 = vadd.f32 %v1786, %v1798
    %v1800 = vpop.f32.mrf.mxu0
    %1801 = vdwg.mxu0
    %1802 = vmatpush.bf16.msra.mxu0 %v1381
    %1803 = vmatpush.bf16.msra.mxu0 %v1380
    %1804 = vmatpush.bf16.msra.mxu0 %v1379
    %1805 = vmatpush.bf16.msra.mxu0 %v1378
    %1806 = vmatpush.bf16.msra.mxu0 %v1377
    %1807 = vmatpush.bf16.msra.mxu0 %v1376
    %1808 = vmatpush.bf16.msra.mxu0 %v1375
    %1809 = vmatpush.bf16.msra.mxu0 %v1374
    %1810 = vmatmul.bf16.gmra.mxu0 %v160
    %v1811 = vpop.f32.mrf.mxu0
    %v1812 = vadd.f32 %v1799, %v1811
    %v1813 = vpop.f32.mrf.mxu0
    %1814 = vdwg.mxu0
    %1815 = vmatpush.bf16.msra.mxu0 %v1389
    %1816 = vmatpush.bf16.msra.mxu0 %v1388
    %1817 = vmatpush.bf16.msra.mxu0 %v1387
    %1818 = vmatpush.bf16.msra.mxu0 %v1386
    %1819 = vmatpush.bf16.msra.mxu0 %v1385
    %1820 = vmatpush.bf16.msra.mxu0 %v1384
    %1821 = vmatpush.bf16.msra.mxu0 %v1383
    %1822 = vmatpush.bf16.msra.mxu0 %v1382
    %1823 = vmatmul.bf16.gmra.mxu0 %v161
    %v1824 = vpop.f32.mrf.mxu0
    %v1825 = vadd.f32 %v1812, %v1824
    %v1826 = vpop.f32.mrf.mxu0
    %1827 = vdwg.mxu0
    %1828 = vmatpush.bf16.msra.mxu0 %v1397
    %1829 = vmatpush.bf16.msra.mxu0 %v1396
    %1830 = vmatpush.bf16.msra.mxu0 %v1395
    %1831 = vmatpush.bf16.msra.mxu0 %v1394
    %1832 = vmatpush.bf16.msra.mxu0 %v1393
    %1833 = vmatpush.bf16.msra.mxu0 %v1392
    %1834 = vmatpush.bf16.msra.mxu0 %v1391
    %1835 = vmatpush.bf16.msra.mxu0 %v1390
    %1836 = vmatmul.bf16.gmra.mxu0 %v162
    %v1837 = vpop.f32.mrf.mxu0
    %v1838 = vadd.f32 %v1825, %v1837
    %v1839 = vpop.f32.mrf.mxu0
    %1840 = vdwg.mxu0
    %1841 = vmatpush.bf16.msra.mxu0 %v1405
    %1842 = vmatpush.bf16.msra.mxu0 %v1404
    %1843 = vmatpush.bf16.msra.mxu0 %v1403
    %1844 = vmatpush.bf16.msra.mxu0 %v1402
    %1845 = vmatpush.bf16.msra.mxu0 %v1401
    %1846 = vmatpush.bf16.msra.mxu0 %v1400
    %1847 = vmatpush.bf16.msra.mxu0 %v1399
    %1848 = vmatpush.bf16.msra.mxu0 %v1398
    %1849 = vmatmul.bf16.gmra.mxu0 %v163
    %v1850 = vpop.f32.mrf.mxu0
    %v1851 = vadd.f32 %v1838, %v1850
    %v1852 = vpop.f32.mrf.mxu0
    %1853 = vdwg.mxu0
    %1854 = vmatpush.bf16.msra.mxu0 %v1413
    %1855 = vmatpush.bf16.msra.mxu0 %v1412
    %1856 = vmatpush.bf16.msra.mxu0 %v1411
    %1857 = vmatpush.bf16.msra.mxu0 %v1410
    %1858 = vmatpush.bf16.msra.mxu0 %v1409
    %1859 = vmatpush.bf16.msra.mxu0 %v1408
    %1860 = vmatpush.bf16.msra.mxu0 %v1407
    %1861 = vmatpush.bf16.msra.mxu0 %v1406
    %1862 = vmatmul.bf16.gmra.mxu0 %v164
    %v1863 = vpop.f32.mrf.mxu0
    %v1864 = vadd.f32 %v1851, %v1863
    %v1865 = vpop.f32.mrf.mxu0
    %1866 = vdwg.mxu0
    %1867 = vmatpush.bf16.msra.mxu0 %v1421
    %1868 = vmatpush.bf16.msra.mxu0 %v1420
    %1869 = vmatpush.bf16.msra.mxu0 %v1419
    %1870 = vmatpush.bf16.msra.mxu0 %v1418
    %1871 = vmatpush.bf16.msra.mxu0 %v1417
    %1872 = vmatpush.bf16.msra.mxu0 %v1416
    %1873 = vmatpush.bf16.msra.mxu0 %v1415
    %1874 = vmatpush.bf16.msra.mxu0 %v1414
    %1875 = vmatmul.bf16.gmra.mxu0 %v165
    %v1876 = vpop.f32.mrf.mxu0
    %v1877 = vadd.f32 %v1864, %v1876
    %v1878 = vpop.f32.mrf.mxu0
    %1879 = vdwg.mxu0
    %1880 = vmatpush.bf16.msra.mxu0 %v1429
    %1881 = vmatpush.bf16.msra.mxu0 %v1428
    %1882 = vmatpush.bf16.msra.mxu0 %v1427
    %1883 = vmatpush.bf16.msra.mxu0 %v1426
    %1884 = vmatpush.bf16.msra.mxu0 %v1425
    %1885 = vmatpush.bf16.msra.mxu0 %v1424
    %1886 = vmatpush.bf16.msra.mxu0 %v1423
    %1887 = vmatpush.bf16.msra.mxu0 %v1422
    %1888 = vmatmul.bf16.gmra.mxu0 %v166
    %v1889 = vpop.f32.mrf.mxu0
    %v1890 = vadd.f32 %v1877, %v1889
    %v1891 = vpop.f32.mrf.mxu0
    %1892 = vdwg.mxu0
    %1893 = vmatpush.bf16.msra.mxu0 %v1437
    %1894 = vmatpush.bf16.msra.mxu0 %v1436
    %1895 = vmatpush.bf16.msra.mxu0 %v1435
    %1896 = vmatpush.bf16.msra.mxu0 %v1434
    %1897 = vmatpush.bf16.msra.mxu0 %v1433
    %1898 = vmatpush.bf16.msra.mxu0 %v1432
    %1899 = vmatpush.bf16.msra.mxu0 %v1431
    %1900 = vmatpush.bf16.msra.mxu0 %v1430
    %1901 = vmatmul.bf16.gmra.mxu0 %v167
    %v1902 = vpop.f32.mrf.mxu0
    %v1903 = vadd.f32 %v1890, %v1902
    %v1904 = vpop.f32.mrf.mxu0
    %1905 = vdwg.mxu0
    %1906 = vmatpush.bf16.msra.mxu0 %v1445
    %1907 = vmatpush.bf16.msra.mxu0 %v1444
    %1908 = vmatpush.bf16.msra.mxu0 %v1443
    %1909 = vmatpush.bf16.msra.mxu0 %v1442
    %1910 = vmatpush.bf16.msra.mxu0 %v1441
    %1911 = vmatpush.bf16.msra.mxu0 %v1440
    %1912 = vmatpush.bf16.msra.mxu0 %v1439
    %1913 = vmatpush.bf16.msra.mxu0 %v1438
    %1914 = vmatmul.bf16.gmra.mxu0 %v168
    %v1915 = vpop.f32.mrf.mxu0
    %v1916 = vadd.f32 %v1903, %v1915
    %v1917 = vpop.f32.mrf.mxu0
    %1918 = vdwg.mxu0
    %1919 = vmatpush.bf16.msra.mxu0 %v1453
    %1920 = vmatpush.bf16.msra.mxu0 %v1452
    %1921 = vmatpush.bf16.msra.mxu0 %v1451
    %1922 = vmatpush.bf16.msra.mxu0 %v1450
    %1923 = vmatpush.bf16.msra.mxu0 %v1449
    %1924 = vmatpush.bf16.msra.mxu0 %v1448
    %1925 = vmatpush.bf16.msra.mxu0 %v1447
    %1926 = vmatpush.bf16.msra.mxu0 %v1446
    %1927 = vmatmul.bf16.gmra.mxu0 %v169
    %v1928 = vpop.f32.mrf.mxu0
    %v1929 = vadd.f32 %v1916, %v1928
    %v1930 = vpop.f32.mrf.mxu0
    %1931 = vdwg.mxu0
    %1932 = vmatpush.bf16.msra.mxu0 %v1461
    %1933 = vmatpush.bf16.msra.mxu0 %v1460
    %1934 = vmatpush.bf16.msra.mxu0 %v1459
    %1935 = vmatpush.bf16.msra.mxu0 %v1458
    %1936 = vmatpush.bf16.msra.mxu0 %v1457
    %1937 = vmatpush.bf16.msra.mxu0 %v1456
    %1938 = vmatpush.bf16.msra.mxu0 %v1455
    %1939 = vmatpush.bf16.msra.mxu0 %v1454
    %1940 = vmatmul.bf16.gmra.mxu0 %v170
    %v1941 = vpop.f32.mrf.mxu0
    %v1942 = vadd.f32 %v1929, %v1941
    %v1943 = vpop.f32.mrf.mxu0
    %1944 = vdwg.mxu0
    %1945 = vmatpush.bf16.msra.mxu0 %v1469
    %1946 = vmatpush.bf16.msra.mxu0 %v1468
    %1947 = vmatpush.bf16.msra.mxu0 %v1467
    %1948 = vmatpush.bf16.msra.mxu0 %v1466
    %1949 = vmatpush.bf16.msra.mxu0 %v1465
    %1950 = vmatpush.bf16.msra.mxu0 %v1464
    %1951 = vmatpush.bf16.msra.mxu0 %v1463
    %1952 = vmatpush.bf16.msra.mxu0 %v1462
    %1953 = vmatmul.bf16.gmra.mxu0 %v171
    %v1954 = vpop.f32.mrf.mxu0
    %v1955 = vadd.f32 %v1942, %v1954
    %v1956 = vpop.f32.mrf.mxu0
    %1957 = vdwg.mxu0
    %1958 = vmatpush.bf16.msra.mxu0 %v1477
    %1959 = vmatpush.bf16.msra.mxu0 %v1476
    %1960 = vmatpush.bf16.msra.mxu0 %v1475
    %1961 = vmatpush.bf16.msra.mxu0 %v1474
    %1962 = vmatpush.bf16.msra.mxu0 %v1473
    %1963 = vmatpush.bf16.msra.mxu0 %v1472
    %1964 = vmatpush.bf16.msra.mxu0 %v1471
    %1965 = vmatpush.bf16.msra.mxu0 %v1470
    %1966 = vmatmul.bf16.gmra.mxu0 %v172
    %v1967 = vpop.f32.mrf.mxu0
    %v1968 = vadd.f32 %v1955, %v1967
    %v1969 = vpop.f32.mrf.mxu0
    %1970 = vdwg.mxu0
    %1971 = vmatpush.bf16.msra.mxu0 %v1485
    %1972 = vmatpush.bf16.msra.mxu0 %v1484
    %1973 = vmatpush.bf16.msra.mxu0 %v1483
    %1974 = vmatpush.bf16.msra.mxu0 %v1482
    %1975 = vmatpush.bf16.msra.mxu0 %v1481
    %1976 = vmatpush.bf16.msra.mxu0 %v1480
    %1977 = vmatpush.bf16.msra.mxu0 %v1479
    %1978 = vmatpush.bf16.msra.mxu0 %v1478
    %1979 = vmatmul.bf16.gmra.mxu0 %v173
    %v1980 = vpop.f32.mrf.mxu0
    %v1981 = vadd.f32 %v1968, %v1980
    %v1982 = vpop.f32.mrf.mxu0
    %1983 = vdwg.mxu0
    %1984 = vmatpush.bf16.msra.mxu0 0
    %1985 = vmatpush.bf16.msra.mxu0 0
    %1986 = vmatpush.bf16.msra.mxu0 0
    %1987 = vmatpush.bf16.msra.mxu0 0
    %1988 = vmatpush.bf16.msra.mxu0 %v1683
    %1989 = vmatpush.bf16.msra.mxu0 %v1488
    %1990 = vmatpush.bf16.msra.mxu0 %v1487
    %1991 = vmatpush.bf16.msra.mxu0 %v1486
    %1992 = vmatmul.bf16.gmra.mxu0 %v1679
    %v1993 = vpop.f32.mrf.mxu0
    %v1994 = vadd.f32 %v1981, %v1993
    %v1995 = vpop.f32.mrf.mxu0
    %1996 = vdwg.mxu0
    %v1997 = vmax.f32 %v1994, 0.0
    %v1998 = vld [vmem:[%s2] sm:$0x1]
    %v2000 = vperm.slane %v1998, 0
    %v2002 = vmul.f32 %v1997, %v2000
    %vm2003 = vcmask 39936
    %v2004 = vsel %vm2003, %v2002, 0.0
    %2005 = vadd.xlane.f32.xlu0 %v2004
    %v2006 = vpop.xlane.xlu0 %2005
    %s2007 = sld [smem:[#allocation3]]
    %v2008 = vstv %s2007
    %v2009 = vadd.f32 %v2006, %v2008
    %v2010 = vmax.f32 %v2009, 0.0
    %2011 = vst [vmem:[#allocation4] sm:$0xff] %v2010
    // Predicated region
    $region22: #{tpu_custom_call.1} parent=1 // pred_check
      _
    $region23: #{tpu_custom_call.1} parent=1 // pred_check_branch
      %2013 = sbr.rel (0) target = $region25
    $region24: #{tpu_custom_call.1} parent=1 // pred_region
      %2015 = vsyncadd [#allocation5], 96
      %s2016 = sshll.u32 [#allocation4], 4
      %s2017 = int_to_ptr.vmem [resolvable:$true] %s2016
      %s2018 = sshll.u32 %s5, 4
      %s2019 = int_to_ptr.hbm [resolvable:$true] %s2018
      %2024 = dma.vmem_to_hbm [thread:$0]  %s2017, 32, %s2019, [#allocation5], 32, 32, 2
    $region25: #{tpu_custom_call.1} parent=1 // pred_fallthru
      _
    // Predicated region
    $region26: #{tpu_custom_call.1} parent=1 // pred_check
      _
    $region27: #{tpu_custom_call.1} parent=1 // pred_check_branch
      %2026 = sbr.rel (0) target = $region29
    $region28: #{tpu_custom_call.1} parent=1 // pred_region
      %2028 = dma.done [#allocation5], 128
    $region29: #{tpu_custom_call.1} parent=1 // pred_fallthru
      _
    %2029 = vsyncpa [#allocation5], 1

</llo_original>
